<compile_context>
chip_gen: v5e
topology: v5e:2x2
jax: 0.10.0
libtpu: 0.0.40
codegen_flags: <defaults>
</compile_context>

<pallas_src>
import functools

import jax
import jax.numpy as jnp
from jax.experimental import pallas as pl
from jax.experimental.pallas import tpu as pltpu  # noqa: F401  (TPU backend; kept for clarity)

# ----------------------------- config (small, synthetic) -----------------------------
B = 2          # batch
L = 8          # decoder / target sequence length
L_ENC = 8      # encoder sequence length
D_MODEL = 32
N_HEADS = 4
D_KV = 8
INNER = N_HEADS * D_KV      # 32
D_FF = 64
EPS = 1e-6
IS_DECODER = True


# ----------------------------- in-kernel helpers -----------------------------
def _layer_norm(x, w, b):
    # standard nn.LayerNorm over last dim (biased variance), w/b shape (1, D); all f32
    mu = jnp.mean(x, axis=-1, keepdims=True)
    var = jnp.mean(jnp.square(x - mu), axis=-1, keepdims=True)
    return (x - mu) * jax.lax.rsqrt(var + EPS) * w + b


def _attention(q2d, k2d, v2d, bias_ref, wo, batch, lq, lk):
    """Multi-head attention core.

    q2d: (B*Lq, INNER) f32   k2d/v2d: (B*Lk, INNER) f32
    bias_ref: (H, B, Lq, Lk) f32 ref (head-major so a cheap leading-axis slice gives one head)
    wo: (INNER, D) bf16
    returns: (B*Lq, D) f32
    """
    bf16 = jnp.bfloat16
    # split the batch back out of the sublane axis only (leading-dim reshape, no lane reshuffle)
    q3 = q2d.reshape(batch, lq, INNER).astype(bf16)
    k3 = k2d.reshape(batch, lk, INNER).astype(bf16)
    v3 = v2d.reshape(batch, lk, INNER).astype(bf16)

    ctx_heads = []
    for hh in range(N_HEADS):                      # heads live on the lane axis: slice per head
        sl = slice(hh * D_KV, (hh + 1) * D_KV)
        s = jnp.einsum('bqd,bkd->bqk', q3[:, :, sl], k3[:, :, sl],
                       preferred_element_type=jnp.float32) + bias_ref[hh]
        m = jnp.max(s, axis=-1, keepdims=True)
        e = jnp.exp(s - m)
        p = e * pl.reciprocal(jnp.sum(e, axis=-1, keepdims=True), approx=True)  # EUP slot
        ctx_heads.append(jnp.einsum('bqk,bkd->bqd', p.astype(bf16), v3[:, :, sl],
                                    preferred_element_type=jnp.float32))
    # repack ctx to (B*Lq, H*d) and do ONE K=INNER output-projection dot (no head-sum)
    ctx = jnp.concatenate(ctx_heads, axis=-1).reshape(batch * lq, INNER)
    return jnp.dot(ctx.astype(bf16), wo, preferred_element_type=jnp.float32)


# ----------------------------- fused T5Block kernel -----------------------------
def _t5_block_kernel(has_cross, batch, lq, lk_enc, *refs):
    if has_cross:
        (h_ref, enc_ref, sbias_ref, cbias_ref,
         sa_lnw, sa_lnb, sa_wqkv, sa_wo,
         ca_lnw, ca_lnb, ca_wq, ca_wkv, ca_wo,
         ff_lnw, ff_lnb, ff_wi, ff_wo, out_ref) = refs
    else:
        (h_ref, sbias_ref,
         sa_lnw, sa_lnb, sa_wqkv, sa_wo,
         ff_lnw, ff_lnb, ff_wi, ff_wo, out_ref) = refs

    bf16 = jnp.bfloat16
    h = h_ref[...]                                              # (B*L, D) f32, VMEM-resident

    # ---- self-attention sublayer (dropout = identity) ----
    normed = _layer_norm(h, sa_lnw[...], sa_lnb[...])
    qkv = jnp.dot(normed.astype(bf16), sa_wqkv[...],            # (B*L, 3*INNER) = (16, 96)
                  preferred_element_type=jnp.float32)
    h = h + _attention(qkv[:, :INNER], qkv[:, INNER:2 * INNER], qkv[:, 2 * INNER:],
                       sbias_ref, sa_wo[...], batch, lq, lq)

    # ---- cross-attention sublayer (kv from raw encoder states) ----
    if has_cross:
        normed = _layer_norm(h, ca_lnw[...], ca_lnb[...])
        q = jnp.dot(normed.astype(bf16), ca_wq[...], preferred_element_type=jnp.float32)
        kv = jnp.dot(enc_ref[...].astype(bf16), ca_wkv[...],    # (B*L_ENC, 2*INNER) = (16, 64)
                     preferred_element_type=jnp.float32)
        h = h + _attention(q, kv[:, :INNER], kv[:, INNER:],
                           cbias_ref, ca_wo[...], batch, lq, lk_enc)

    # ---- gated-gelu feed-forward sublayer ----
    normed = _layer_norm(h, ff_lnw[...], ff_lnb[...])
    gl = jnp.dot(normed.astype(bf16), ff_wi[...],               # (B*L, 2*D_FF) = (16, 128) lanes
                 preferred_element_type=jnp.float32)
    gated = jax.nn.gelu(gl[:, :D_FF], approximate=True) * gl[:, D_FF:]   # f32 elementwise
    h = h + jnp.dot(gated.astype(bf16), ff_wo[...], preferred_element_type=jnp.float32)

    # D_MODEL = 32 < 128 lanes so this store is masked; at real D_MODEL (>=128) it is full-width.
    out_ref[...] = h


# ----------------------------- wrapper-side weight packing -----------------------------
def pack_params(params):
    """Fuse weights once in the wrapper and pre-cast MXU operands to bf16."""
    bf16 = jnp.bfloat16
    sa, ca, ff = params["self_attn"], params["cross_attn"], params["ff"]
    return dict(
        self_attn=dict(
            ln_w=sa["ln_w"], ln_b=sa["ln_b"],
            wqkv=jnp.concatenate([sa["wq"], sa["wk"], sa["wv"]], axis=-1).astype(bf16),  # (D, 96)
            wo=sa["wo"].astype(bf16),                                                    # (INNER, D)
        ),
        cross_attn=dict(
            ln_w=ca["ln_w"], ln_b=ca["ln_b"],
            wq=ca["wq"].astype(bf16),                                                    # (D, INNER)
            wkv=jnp.concatenate([ca["wk"], ca["wv"]], axis=-1).astype(bf16),             # (D, 64)
            wo=ca["wo"].astype(bf16),
        ),
        ff=dict(
            ln_w=ff["ln_w"], ln_b=ff["ln_b"],
            wi=jnp.concatenate([ff["wi0"], ff["wi1"]], axis=-1).astype(bf16),            # (D, 128)
            wo=ff["wo"].astype(bf16),                                                    # (D_FF, D)
        ),
    )


# ----------------------------- wrapper -----------------------------
def t5_block(hidden_states, packed, attention_bias, encoder_hidden_states=None,
             encoder_decoder_bias=None, is_decoder=IS_DECODER):
    b, l, d = hidden_states.shape
    has_cross = bool(is_decoder and encoder_hidden_states is not None)
    l_enc = encoder_hidden_states.shape[1] if has_cross else 0

    sa, ff = packed["self_attn"], packed["ff"]

    # Fold batch into the sublane axis; present biases head-major (cheap per-head slice in-kernel).
    inputs = [hidden_states.reshape(b * l, d)]
    if has_cross:
        inputs.append(encoder_hidden_states.reshape(b * l_enc, d))
    inputs.append(jnp.transpose(attention_bias, (1, 0, 2, 3)))               # (H, B, L, L)
    if has_cross:
        inputs.append(jnp.transpose(encoder_decoder_bias, (1, 0, 2, 3)))     # (H, B, L, L_enc)
    inputs += [sa["ln_w"], sa["ln_b"], sa["wqkv"], sa["wo"]]
    if has_cross:
        ca = packed["cross_attn"]
        inputs += [ca["ln_w"], ca["ln_b"], ca["wq"], ca["wkv"], ca["wo"]]
    inputs += [ff["ln_w"], ff["ln_b"], ff["wi"], ff["wo"]]

    # No grid: the whole working set (~10 KB) runs in a single step with every operand staged
    # whole into VMEM -> no per-grid-step overhead and no weight double-buffering.
    out = pl.pallas_call(
        functools.partial(_t5_block_kernel, has_cross, b, l, l_enc),
        out_shape=jax.ShapeDtypeStruct((b * l, d), jnp.float32),
    )(*inputs)

    outputs = (out.reshape(b, l, d), attention_bias)        # position_bias pass-through
    if has_cross:
        outputs = outputs + (encoder_decoder_bias,)
    return outputs


# ----------------------------- pure-JAX reference -----------------------------
def _ref_ln(x, w, b):
    mu = jnp.mean(x, axis=-1, keepdims=True)
    var = jnp.mean(jnp.square(x - mu), axis=-1, keepdims=True)
    return (x - mu) / jnp.sqrt(var + EPS) * w + b


def _ref_attn(hidden, kv, bias, p, is_self):
    normed = _ref_ln(hidden, p["ln_w"][0], p["ln_b"][0])
    kv_src = normed if is_self else kv
    q = normed @ p["wq"]
    k = kv_src @ p["wk"]
    v = kv_src @ p["wv"]

    def split(x):
        bb, ll, _ = x.shape
        return x.reshape(bb, ll, N_HEADS, D_KV).transpose(0, 2, 1, 3)

    qh, kh, vh = split(q), split(k), split(v)
    scores = jnp.einsum("bhqd,bhkd->bhqk", qh, kh) + bias
    probs = jax.nn.softmax(scores, axis=-1)
    ctx = jnp.einsum("bhqk,bhkd->bhqd", probs, vh).transpose(0, 2, 1, 3).reshape(
        hidden.shape[0], -1, INNER)
    return hidden + ctx @ p["wo"]


def _ref_ff(hidden, p):
    normed = _ref_ln(hidden, p["ln_w"][0], p["ln_b"][0])
    g = jax.nn.gelu(normed @ p["wi0"], approximate=True)
    return hidden + (g * (normed @ p["wi1"])) @ p["wo"]


def ref_block(hidden, params, bias, enc_hidden, cross_bias, is_decoder=IS_DECODER):
    h = _ref_attn(hidden, hidden, bias, params["self_attn"], True)
    if is_decoder and enc_hidden is not None:
        h = _ref_attn(h, enc_hidden, cross_bias, params["cross_attn"], False)
    return _ref_ff(h, params["ff"])


# ----------------------------- deterministic parameter init -----------------------------
def init_params(key):
    def nrm(k, shape, scale=0.05):
        return scale * jax.random.normal(k, shape, dtype=jnp.float32)

    ks = jax.random.split(key, 16)

    def attn_params(k0, k1, k2, k3):
        return dict(
            ln_w=jnp.ones((1, D_MODEL), jnp.float32),
            ln_b=jnp.zeros((1, D_MODEL), jnp.float32),
            wq=nrm(k0, (D_MODEL, INNER)),
            wk=nrm(k1, (D_MODEL, INNER)),
            wv=nrm(k2, (D_MODEL, INNER)),
            wo=nrm(k3, (INNER, D_MODEL)),
        )

    return dict(
        self_attn=attn_params(ks[0], ks[1], ks[2], ks[3]),
        cross_attn=attn_params(ks[4], ks[5], ks[6], ks[7]),
        ff=dict(
            ln_w=jnp.ones((1, D_MODEL), jnp.float32),
            ln_b=jnp.zeros((1, D_MODEL), jnp.float32),
            wi0=nrm(ks[8], (D_MODEL, D_FF)),
            wi1=nrm(ks[9], (D_MODEL, D_FF)),
            wo=nrm(ks[10], (D_FF, D_MODEL)),
        ),
    )


# ----------------------------- main -----------------------------
if __name__ == "__main__":
    key = jax.random.PRNGKey(0)
    kx, ke, kp = jax.random.split(key, 3)

    hidden_states = jax.random.normal(kx, (B, L, D_MODEL), dtype=jnp.float32)
    encoder_hidden_states = jax.random.normal(ke, (B, L_ENC, D_MODEL), dtype=jnp.float32)
    params = init_params(kp)
    packed = pack_params(params)

    # decoder self-attention: causal additive mask (combined mask + position_bias), kept in f32
    causal = jnp.where(jnp.arange(L)[:, None] >= jnp.arange(L)[None, :], 0.0, -1e9)
    self_bias = jnp.broadcast_to(causal, (B, N_HEADS, L, L)).astype(jnp.float32)
    # cross-attention: no masking / no relative bias
    cross_bias = jnp.zeros((B, N_HEADS, L, L_ENC), dtype=jnp.float32)

    outputs = t5_block(hidden_states, packed, self_bias,
                       encoder_hidden_states=encoder_hidden_states,
                       encoder_decoder_bias=cross_bias)
    out = jax.block_until_ready(outputs[0])

    ref = ref_block(hidden_states, params, self_bias, encoder_hidden_states, cross_bias)
    # Tolerance reflects bf16 MXU operands (+ EUP approximate reciprocal) vs the pure-f32
    # reference; the output is residual-dominated so errors stay well inside these bounds.
    if not jnp.allclose(out, ref, rtol=1e-2, atol=5e-3):
        max_err = float(jnp.max(jnp.abs(out - ref)))
        raise AssertionError(
            f"Pallas T5Block output mismatch vs JAX reference (max abs err {max_err:.3e})")

    print("KERNEL_OK")
</pallas_src>

<mosaic_0001>
module attributes {stable_mosaic.version = 11 : i64} {
  func.func @_t5_block_kernel(%arg0: memref<16x32xf32, #tpu.memory_space<vmem>>, %arg1: memref<16x32xf32, #tpu.memory_space<vmem>>, %arg2: memref<4x2x8x8xf32, #tpu.memory_space<vmem>>, %arg3: memref<4x2x8x8xf32, #tpu.memory_space<vmem>>, %arg4: memref<1x32xf32, #tpu.memory_space<vmem>>, %arg5: memref<1x32xf32, #tpu.memory_space<vmem>>, %arg6: memref<32x96xbf16, #tpu.memory_space<vmem>>, %arg7: memref<32x32xbf16, #tpu.memory_space<vmem>>, %arg8: memref<1x32xf32, #tpu.memory_space<vmem>>, %arg9: memref<1x32xf32, #tpu.memory_space<vmem>>, %arg10: memref<32x32xbf16, #tpu.memory_space<vmem>>, %arg11: memref<32x64xbf16, #tpu.memory_space<vmem>>, %arg12: memref<32x32xbf16, #tpu.memory_space<vmem>>, %arg13: memref<1x32xf32, #tpu.memory_space<vmem>>, %arg14: memref<1x32xf32, #tpu.memory_space<vmem>>, %arg15: memref<32x128xbf16, #tpu.memory_space<vmem>>, %arg16: memref<64x32xbf16, #tpu.memory_space<vmem>>, %arg17: memref<16x32xf32, #tpu.memory_space<vmem>>) attributes {dimension_semantics = [], scalar_prefetch = 0 : i64, scratch_operands = 0 : i64, tpu.core_type = #tpu.core_type<tc>} {
    %c0 = arith.constant 0 : index
    %c0_0 = arith.constant 0 : index
    %0 = vector.load %arg0[%c0, %c0_0] : memref<16x32xf32, #tpu.memory_space<vmem>>, vector<16x32xf32>
    %c0_1 = arith.constant 0 : index
    %c0_2 = arith.constant 0 : index
    %1 = vector.load %arg4[%c0_1, %c0_2] : memref<1x32xf32, #tpu.memory_space<vmem>>, vector<1x32xf32>
    %c0_3 = arith.constant 0 : index
    %c0_4 = arith.constant 0 : index
    %2 = vector.load %arg5[%c0_3, %c0_4] : memref<1x32xf32, #tpu.memory_space<vmem>>, vector<1x32xf32>
    %cst = arith.constant dense<0.000000e+00> : vector<16xf32>
    %3 = vector.multi_reduction <add>, %0, %cst [1] : vector<16x32xf32> to vector<16xf32>
    %4 = vector.shape_cast %3 : vector<16xf32> to vector<16x1xf32>
    %cst_5 = arith.constant 3.200000e+01 : f32
    %5 = vector.broadcast %cst_5 : f32 to vector<16x1xf32>
    %6 = arith.divf %4, %5 : vector<16x1xf32>
    %7 = vector.broadcast %6 : vector<16x1xf32> to vector<16x32xf32>
    %8 = arith.subf %0, %7 : vector<16x32xf32>
    %9 = arith.mulf %8, %8 : vector<16x32xf32>
    %cst_6 = arith.constant dense<0.000000e+00> : vector<16xf32>
    %10 = vector.multi_reduction <add>, %9, %cst_6 [1] : vector<16x32xf32> to vector<16xf32>
    %11 = vector.shape_cast %10 : vector<16xf32> to vector<16x1xf32>
    %cst_7 = arith.constant 3.200000e+01 : f32
    %12 = vector.broadcast %cst_7 : f32 to vector<16x1xf32>
    %13 = arith.divf %11, %12 : vector<16x1xf32>
    %14 = vector.broadcast %6 : vector<16x1xf32> to vector<16x32xf32>
    %15 = arith.subf %0, %14 : vector<16x32xf32>
    %cst_8 = arith.constant 9.99999997E-7 : f32
    %16 = vector.broadcast %cst_8 : f32 to vector<16x1xf32>
    %17 = arith.addf %13, %16 : vector<16x1xf32>
    %18 = math.rsqrt %17 : vector<16x1xf32>
    %19 = vector.broadcast %18 : vector<16x1xf32> to vector<16x32xf32>
    %20 = arith.mulf %15, %19 : vector<16x32xf32>
    %21 = vector.broadcast %1 : vector<1x32xf32> to vector<16x32xf32>
    %22 = arith.mulf %20, %21 : vector<16x32xf32>
    %23 = vector.broadcast %2 : vector<1x32xf32> to vector<16x32xf32>
    %24 = arith.addf %22, %23 : vector<16x32xf32>
    %25 = arith.truncf %24 : vector<16x32xf32> to vector<16x32xbf16>
    %c0_9 = arith.constant 0 : index
    %c0_10 = arith.constant 0 : index
    %26 = vector.load %arg6[%c0_9, %c0_10] : memref<32x96xbf16, #tpu.memory_space<vmem>>, vector<32x96xbf16>
    %cst_11 = arith.constant dense<0.000000e+00> : vector<16x96xf32>
    %27 = tpu.matmul %25, %26, %cst_11 {dimension_numbers = #tpu.dot_dimension_numbers<[1], [0], [0], [1], [0, 0, 1, 1], [], []>} : vector<16x32xbf16>, vector<32x96xbf16>, vector<16x96xf32> -> vector<16x96xf32>
    %28 = vector.extract_strided_slice %27 {offsets = [0, 0], sizes = [16, 32], strides = [1, 1]} : vector<16x96xf32> to vector<16x32xf32>
    %29 = vector.extract_strided_slice %27 {offsets = [0, 32], sizes = [16, 32], strides = [1, 1]} : vector<16x96xf32> to vector<16x32xf32>
    %30 = vector.extract_strided_slice %27 {offsets = [0, 64], sizes = [16, 32], strides = [1, 1]} : vector<16x96xf32> to vector<16x32xf32>
    %c0_12 = arith.constant 0 : index
    %c0_13 = arith.constant 0 : index
    %31 = vector.load %arg7[%c0_12, %c0_13] : memref<32x32xbf16, #tpu.memory_space<vmem>>, vector<32x32xbf16>
    %32 = vector.shape_cast %28 : vector<16x32xf32> to vector<2x8x32xf32>
    %33 = arith.truncf %32 : vector<2x8x32xf32> to vector<2x8x32xbf16>
    %34 = vector.shape_cast %29 : vector<16x32xf32> to vector<2x8x32xf32>
    %35 = arith.truncf %34 : vector<2x8x32xf32> to vector<2x8x32xbf16>
    %36 = vector.shape_cast %30 : vector<16x32xf32> to vector<2x8x32xf32>
    %37 = arith.truncf %36 : vector<2x8x32xf32> to vector<2x8x32xbf16>
    %38 = vector.extract_strided_slice %33 {offsets = [0, 0, 0], sizes = [2, 8, 8], strides = [1, 1, 1]} : vector<2x8x32xbf16> to vector<2x8x8xbf16>
    %39 = vector.extract_strided_slice %35 {offsets = [0, 0, 0], sizes = [2, 8, 8], strides = [1, 1, 1]} : vector<2x8x32xbf16> to vector<2x8x8xbf16>
    "tpu.trace_start"() <{level = 10 : i32, message = "bqd,bkd->bqk"}> : () -> ()
    %cst_14 = arith.constant dense<0.000000e+00> : vector<2x8x8xf32>
    %40 = tpu.matmul %38, %39, %cst_14 {dimension_numbers = #tpu.dot_dimension_numbers<[2], [2], [1], [1], [0, 0, 0, 1, 1, 1], [0], [0]>} : vector<2x8x8xbf16>, vector<2x8x8xbf16>, vector<2x8x8xf32> -> vector<2x8x8xf32>
    "tpu.trace_stop"() : () -> ()
    %c0_15 = arith.constant 0 : index
    %c0_16 = arith.constant 0 : index
    %c0_17 = arith.constant 0 : index
    %c0_18 = arith.constant 0 : index
    %41 = vector.load %arg2[%c0_15, %c0_16, %c0_17, %c0_18] : memref<4x2x8x8xf32, #tpu.memory_space<vmem>>, vector<1x2x8x8xf32>
    %42 = vector.shape_cast %41 : vector<1x2x8x8xf32> to vector<2x8x8xf32>
    %43 = arith.addf %40, %42 : vector<2x8x8xf32>
    %cst_19 = arith.constant dense<0xFF800000> : vector<2x8xf32>
    %44 = vector.multi_reduction <maximumf>, %43, %cst_19 [2] : vector<2x8x8xf32> to vector<2x8xf32>
    %45 = vector.shape_cast %44 : vector<2x8xf32> to vector<2x8x1xf32>
    %46 = vector.broadcast %45 : vector<2x8x1xf32> to vector<2x8x8xf32>
    %47 = arith.subf %43, %46 : vector<2x8x8xf32>
    %48 = math.exp %47 : vector<2x8x8xf32>
    %cst_20 = arith.constant dense<0.000000e+00> : vector<2x8xf32>
    %49 = vector.multi_reduction <add>, %48, %cst_20 [2] : vector<2x8x8xf32> to vector<2x8xf32>
    %50 = vector.shape_cast %49 : vector<2x8xf32> to vector<2x8x1xf32>
    %51 = tpu.reciprocal %50 {approx = true} : vector<2x8x1xf32> -> vector<2x8x1xf32>
    %52 = vector.broadcast %51 : vector<2x8x1xf32> to vector<2x8x8xf32>
    %53 = arith.mulf %48, %52 : vector<2x8x8xf32>
    %54 = arith.truncf %53 : vector<2x8x8xf32> to vector<2x8x8xbf16>
    %55 = vector.extract_strided_slice %37 {offsets = [0, 0, 0], sizes = [2, 8, 8], strides = [1, 1, 1]} : vector<2x8x32xbf16> to vector<2x8x8xbf16>
    "tpu.trace_start"() <{level = 10 : i32, message = "bqk,bkd->bqd"}> : () -> ()
    %cst_21 = arith.constant dense<0.000000e+00> : vector<2x8x8xf32>
    %56 = tpu.matmul %54, %55, %cst_21 {dimension_numbers = #tpu.dot_dimension_numbers<[2], [1], [1], [2], [0, 0, 0, 1, 1, 2], [0], [0]>} : vector<2x8x8xbf16>, vector<2x8x8xbf16>, vector<2x8x8xf32> -> vector<2x8x8xf32>
    "tpu.trace_stop"() : () -> ()
    %57 = vector.extract_strided_slice %33 {offsets = [0, 0, 8], sizes = [2, 8, 8], strides = [1, 1, 1]} : vector<2x8x32xbf16> to vector<2x8x8xbf16>
    %58 = vector.extract_strided_slice %35 {offsets = [0, 0, 8], sizes = [2, 8, 8], strides = [1, 1, 1]} : vector<2x8x32xbf16> to vector<2x8x8xbf16>
    "tpu.trace_start"() <{level = 10 : i32, message = "bqd,bkd->bqk"}> : () -> ()
    %cst_22 = arith.constant dense<0.000000e+00> : vector<2x8x8xf32>
    %59 = tpu.matmul %57, %58, %cst_22 {dimension_numbers = #tpu.dot_dimension_numbers<[2], [2], [1], [1], [0, 0, 0, 1, 1, 1], [0], [0]>} : vector<2x8x8xbf16>, vector<2x8x8xbf16>, vector<2x8x8xf32> -> vector<2x8x8xf32>
    "tpu.trace_stop"() : () -> ()
    %c1 = arith.constant 1 : index
    %c0_23 = arith.constant 0 : index
    %c0_24 = arith.constant 0 : index
    %c0_25 = arith.constant 0 : index
    %60 = vector.load %arg2[%c1, %c0_23, %c0_24, %c0_25] : memref<4x2x8x8xf32, #tpu.memory_space<vmem>>, vector<1x2x8x8xf32>
    %61 = vector.shape_cast %60 : vector<1x2x8x8xf32> to vector<2x8x8xf32>
    %62 = arith.addf %59, %61 : vector<2x8x8xf32>
    %cst_26 = arith.constant dense<0xFF800000> : vector<2x8xf32>
    %63 = vector.multi_reduction <maximumf>, %62, %cst_26 [2] : vector<2x8x8xf32> to vector<2x8xf32>
    %64 = vector.shape_cast %63 : vector<2x8xf32> to vector<2x8x1xf32>
    %65 = vector.broadcast %64 : vector<2x8x1xf32> to vector<2x8x8xf32>
    %66 = arith.subf %62, %65 : vector<2x8x8xf32>
    %67 = math.exp %66 : vector<2x8x8xf32>
    %cst_27 = arith.constant dense<0.000000e+00> : vector<2x8xf32>
    %68 = vector.multi_reduction <add>, %67, %cst_27 [2] : vector<2x8x8xf32> to vector<2x8xf32>
    %69 = vector.shape_cast %68 : vector<2x8xf32> to vector<2x8x1xf32>
    %70 = tpu.reciprocal %69 {approx = true} : vector<2x8x1xf32> -> vector<2x8x1xf32>
    %71 = vector.broadcast %70 : vector<2x8x1xf32> to vector<2x8x8xf32>
    %72 = arith.mulf %67, %71 : vector<2x8x8xf32>
    %73 = arith.truncf %72 : vector<2x8x8xf32> to vector<2x8x8xbf16>
    %74 = vector.extract_strided_slice %37 {offsets = [0, 0, 8], sizes = [2, 8, 8], strides = [1, 1, 1]} : vector<2x8x32xbf16> to vector<2x8x8xbf16>
    "tpu.trace_start"() <{level = 10 : i32, message = "bqk,bkd->bqd"}> : () -> ()
    %cst_28 = arith.constant dense<0.000000e+00> : vector<2x8x8xf32>
    %75 = tpu.matmul %73, %74, %cst_28 {dimension_numbers = #tpu.dot_dimension_numbers<[2], [1], [1], [2], [0, 0, 0, 1, 1, 2], [0], [0]>} : vector<2x8x8xbf16>, vector<2x8x8xbf16>, vector<2x8x8xf32> -> vector<2x8x8xf32>
    "tpu.trace_stop"() : () -> ()
    %76 = vector.extract_strided_slice %33 {offsets = [0, 0, 16], sizes = [2, 8, 8], strides = [1, 1, 1]} : vector<2x8x32xbf16> to vector<2x8x8xbf16>
    %77 = vector.extract_strided_slice %35 {offsets = [0, 0, 16], sizes = [2, 8, 8], strides = [1, 1, 1]} : vector<2x8x32xbf16> to vector<2x8x8xbf16>
    "tpu.trace_start"() <{level = 10 : i32, message = "bqd,bkd->bqk"}> : () -> ()
    %cst_29 = arith.constant dense<0.000000e+00> : vector<2x8x8xf32>
    %78 = tpu.matmul %76, %77, %cst_29 {dimension_numbers = #tpu.dot_dimension_numbers<[2], [2], [1], [1], [0, 0, 0, 1, 1, 1], [0], [0]>} : vector<2x8x8xbf16>, vector<2x8x8xbf16>, vector<2x8x8xf32> -> vector<2x8x8xf32>
    "tpu.trace_stop"() : () -> ()
    %c2 = arith.constant 2 : index
    %c0_30 = arith.constant 0 : index
    %c0_31 = arith.constant 0 : index
    %c0_32 = arith.constant 0 : index
    %79 = vector.load %arg2[%c2, %c0_30, %c0_31, %c0_32] : memref<4x2x8x8xf32, #tpu.memory_space<vmem>>, vector<1x2x8x8xf32>
    %80 = vector.shape_cast %79 : vector<1x2x8x8xf32> to vector<2x8x8xf32>
    %81 = arith.addf %78, %80 : vector<2x8x8xf32>
    %cst_33 = arith.constant dense<0xFF800000> : vector<2x8xf32>
    %82 = vector.multi_reduction <maximumf>, %81, %cst_33 [2] : vector<2x8x8xf32> to vector<2x8xf32>
    %83 = vector.shape_cast %82 : vector<2x8xf32> to vector<2x8x1xf32>
    %84 = vector.broadcast %83 : vector<2x8x1xf32> to vector<2x8x8xf32>
    %85 = arith.subf %81, %84 : vector<2x8x8xf32>
    %86 = math.exp %85 : vector<2x8x8xf32>
    %cst_34 = arith.constant dense<0.000000e+00> : vector<2x8xf32>
    %87 = vector.multi_reduction <add>, %86, %cst_34 [2] : vector<2x8x8xf32> to vector<2x8xf32>
    %88 = vector.shape_cast %87 : vector<2x8xf32> to vector<2x8x1xf32>
    %89 = tpu.reciprocal %88 {approx = true} : vector<2x8x1xf32> -> vector<2x8x1xf32>
    %90 = vector.broadcast %89 : vector<2x8x1xf32> to vector<2x8x8xf32>
    %91 = arith.mulf %86, %90 : vector<2x8x8xf32>
    %92 = arith.truncf %91 : vector<2x8x8xf32> to vector<2x8x8xbf16>
    %93 = vector.extract_strided_slice %37 {offsets = [0, 0, 16], sizes = [2, 8, 8], strides = [1, 1, 1]} : vector<2x8x32xbf16> to vector<2x8x8xbf16>
    "tpu.trace_start"() <{level = 10 : i32, message = "bqk,bkd->bqd"}> : () -> ()
    %cst_35 = arith.constant dense<0.000000e+00> : vector<2x8x8xf32>
    %94 = tpu.matmul %92, %93, %cst_35 {dimension_numbers = #tpu.dot_dimension_numbers<[2], [1], [1], [2], [0, 0, 0, 1, 1, 2], [0], [0]>} : vector<2x8x8xbf16>, vector<2x8x8xbf16>, vector<2x8x8xf32> -> vector<2x8x8xf32>
    "tpu.trace_stop"() : () -> ()
    %95 = vector.extract_strided_slice %33 {offsets = [0, 0, 24], sizes = [2, 8, 8], strides = [1, 1, 1]} : vector<2x8x32xbf16> to vector<2x8x8xbf16>
    %96 = vector.extract_strided_slice %35 {offsets = [0, 0, 24], sizes = [2, 8, 8], strides = [1, 1, 1]} : vector<2x8x32xbf16> to vector<2x8x8xbf16>
    "tpu.trace_start"() <{level = 10 : i32, message = "bqd,bkd->bqk"}> : () -> ()
    %cst_36 = arith.constant dense<0.000000e+00> : vector<2x8x8xf32>
    %97 = tpu.matmul %95, %96, %cst_36 {dimension_numbers = #tpu.dot_dimension_numbers<[2], [2], [1], [1], [0, 0, 0, 1, 1, 1], [0], [0]>} : vector<2x8x8xbf16>, vector<2x8x8xbf16>, vector<2x8x8xf32> -> vector<2x8x8xf32>
    "tpu.trace_stop"() : () -> ()
    %c3 = arith.constant 3 : index
    %c0_37 = arith.constant 0 : index
    %c0_38 = arith.constant 0 : index
    %c0_39 = arith.constant 0 : index
    %98 = vector.load %arg2[%c3, %c0_37, %c0_38, %c0_39] : memref<4x2x8x8xf32, #tpu.memory_space<vmem>>, vector<1x2x8x8xf32>
    %99 = vector.shape_cast %98 : vector<1x2x8x8xf32> to vector<2x8x8xf32>
    %100 = arith.addf %97, %99 : vector<2x8x8xf32>
    %cst_40 = arith.constant dense<0xFF800000> : vector<2x8xf32>
    %101 = vector.multi_reduction <maximumf>, %100, %cst_40 [2] : vector<2x8x8xf32> to vector<2x8xf32>
    %102 = vector.shape_cast %101 : vector<2x8xf32> to vector<2x8x1xf32>
    %103 = vector.broadcast %102 : vector<2x8x1xf32> to vector<2x8x8xf32>
    %104 = arith.subf %100, %103 : vector<2x8x8xf32>
    %105 = math.exp %104 : vector<2x8x8xf32>
    %cst_41 = arith.constant dense<0.000000e+00> : vector<2x8xf32>
    %106 = vector.multi_reduction <add>, %105, %cst_41 [2] : vector<2x8x8xf32> to vector<2x8xf32>
    %107 = vector.shape_cast %106 : vector<2x8xf32> to vector<2x8x1xf32>
    %108 = tpu.reciprocal %107 {approx = true} : vector<2x8x1xf32> -> vector<2x8x1xf32>
    %109 = vector.broadcast %108 : vector<2x8x1xf32> to vector<2x8x8xf32>
    %110 = arith.mulf %105, %109 : vector<2x8x8xf32>
    %111 = arith.truncf %110 : vector<2x8x8xf32> to vector<2x8x8xbf16>
    %112 = vector.extract_strided_slice %37 {offsets = [0, 0, 24], sizes = [2, 8, 8], strides = [1, 1, 1]} : vector<2x8x32xbf16> to vector<2x8x8xbf16>
    "tpu.trace_start"() <{level = 10 : i32, message = "bqk,bkd->bqd"}> : () -> ()
    %cst_42 = arith.constant dense<0.000000e+00> : vector<2x8x8xf32>
    %113 = tpu.matmul %111, %112, %cst_42 {dimension_numbers = #tpu.dot_dimension_numbers<[2], [1], [1], [2], [0, 0, 0, 1, 1, 2], [0], [0]>} : vector<2x8x8xbf16>, vector<2x8x8xbf16>, vector<2x8x8xf32> -> vector<2x8x8xf32>
    "tpu.trace_stop"() : () -> ()
    %114 = tpu.concatenate %56, %75, %94, %113 in 2 : vector<2x8x8xf32>, vector<2x8x8xf32>, vector<2x8x8xf32>, vector<2x8x8xf32> -> vector<2x8x32xf32>
    %115 = vector.shape_cast %114 : vector<2x8x32xf32> to vector<16x32xf32>
    %116 = arith.truncf %115 : vector<16x32xf32> to vector<16x32xbf16>
    %cst_43 = arith.constant dense<0.000000e+00> : vector<16x32xf32>
    %117 = tpu.matmul %116, %31, %cst_43 {dimension_numbers = #tpu.dot_dimension_numbers<[1], [0], [0], [1], [0, 0, 1, 1], [], []>} : vector<16x32xbf16>, vector<32x32xbf16>, vector<16x32xf32> -> vector<16x32xf32>
    %118 = arith.addf %0, %117 : vector<16x32xf32>
    %c0_44 = arith.constant 0 : index
    %c0_45 = arith.constant 0 : index
    %119 = vector.load %arg8[%c0_44, %c0_45] : memref<1x32xf32, #tpu.memory_space<vmem>>, vector<1x32xf32>
    %c0_46 = arith.constant 0 : index
    %c0_47 = arith.constant 0 : index
    %120 = vector.load %arg9[%c0_46, %c0_47] : memref<1x32xf32, #tpu.memory_space<vmem>>, vector<1x32xf32>
    %cst_48 = arith.constant dense<0.000000e+00> : vector<16xf32>
    %121 = vector.multi_reduction <add>, %118, %cst_48 [1] : vector<16x32xf32> to vector<16xf32>
    %122 = vector.shape_cast %121 : vector<16xf32> to vector<16x1xf32>
    %cst_49 = arith.constant 3.200000e+01 : f32
    %123 = vector.broadcast %cst_49 : f32 to vector<16x1xf32>
    %124 = arith.divf %122, %123 : vector<16x1xf32>
    %125 = vector.broadcast %124 : vector<16x1xf32> to vector<16x32xf32>
    %126 = arith.subf %118, %125 : vector<16x32xf32>
    %127 = arith.mulf %126, %126 : vector<16x32xf32>
    %cst_50 = arith.constant dense<0.000000e+00> : vector<16xf32>
    %128 = vector.multi_reduction <add>, %127, %cst_50 [1] : vector<16x32xf32> to vector<16xf32>
    %129 = vector.shape_cast %128 : vector<16xf32> to vector<16x1xf32>
    %cst_51 = arith.constant 3.200000e+01 : f32
    %130 = vector.broadcast %cst_51 : f32 to vector<16x1xf32>
    %131 = arith.divf %129, %130 : vector<16x1xf32>
    %132 = vector.broadcast %124 : vector<16x1xf32> to vector<16x32xf32>
    %133 = arith.subf %118, %132 : vector<16x32xf32>
    %cst_52 = arith.constant 9.99999997E-7 : f32
    %134 = vector.broadcast %cst_52 : f32 to vector<16x1xf32>
    %135 = arith.addf %131, %134 : vector<16x1xf32>
    %136 = math.rsqrt %135 : vector<16x1xf32>
    %137 = vector.broadcast %136 : vector<16x1xf32> to vector<16x32xf32>
    %138 = arith.mulf %133, %137 : vector<16x32xf32>
    %139 = vector.broadcast %119 : vector<1x32xf32> to vector<16x32xf32>
    %140 = arith.mulf %138, %139 : vector<16x32xf32>
    %141 = vector.broadcast %120 : vector<1x32xf32> to vector<16x32xf32>
    %142 = arith.addf %140, %141 : vector<16x32xf32>
    %143 = arith.truncf %142 : vector<16x32xf32> to vector<16x32xbf16>
    %c0_53 = arith.constant 0 : index
    %c0_54 = arith.constant 0 : index
    %144 = vector.load %arg10[%c0_53, %c0_54] : memref<32x32xbf16, #tpu.memory_space<vmem>>, vector<32x32xbf16>
    %cst_55 = arith.constant dense<0.000000e+00> : vector<16x32xf32>
    %145 = tpu.matmul %143, %144, %cst_55 {dimension_numbers = #tpu.dot_dimension_numbers<[1], [0], [0], [1], [0, 0, 1, 1], [], []>} : vector<16x32xbf16>, vector<32x32xbf16>, vector<16x32xf32> -> vector<16x32xf32>
    %c0_56 = arith.constant 0 : index
    %c0_57 = arith.constant 0 : index
    %146 = vector.load %arg1[%c0_56, %c0_57] : memref<16x32xf32, #tpu.memory_space<vmem>>, vector<16x32xf32>
    %147 = arith.truncf %146 : vector<16x32xf32> to vector<16x32xbf16>
    %c0_58 = arith.constant 0 : index
    %c0_59 = arith.constant 0 : index
    %148 = vector.load %arg11[%c0_58, %c0_59] : memref<32x64xbf16, #tpu.memory_space<vmem>>, vector<32x64xbf16>
    %cst_60 = arith.constant dense<0.000000e+00> : vector<16x64xf32>
    %149 = tpu.matmul %147, %148, %cst_60 {dimension_numbers = #tpu.dot_dimension_numbers<[1], [0], [0], [1], [0, 0, 1, 1], [], []>} : vector<16x32xbf16>, vector<32x64xbf16>, vector<16x64xf32> -> vector<16x64xf32>
    %150 = vector.extract_strided_slice %149 {offsets = [0, 0], sizes = [16, 32], strides = [1, 1]} : vector<16x64xf32> to vector<16x32xf32>
    %151 = vector.extract_strided_slice %149 {offsets = [0, 32], sizes = [16, 32], strides = [1, 1]} : vector<16x64xf32> to vector<16x32xf32>
    %c0_61 = arith.constant 0 : index
    %c0_62 = arith.constant 0 : index
    %152 = vector.load %arg12[%c0_61, %c0_62] : memref<32x32xbf16, #tpu.memory_space<vmem>>, vector<32x32xbf16>
    %153 = vector.shape_cast %145 : vector<16x32xf32> to vector<2x8x32xf32>
    %154 = arith.truncf %153 : vector<2x8x32xf32> to vector<2x8x32xbf16>
    %155 = vector.shape_cast %150 : vector<16x32xf32> to vector<2x8x32xf32>
    %156 = arith.truncf %155 : vector<2x8x32xf32> to vector<2x8x32xbf16>
    %157 = vector.shape_cast %151 : vector<16x32xf32> to vector<2x8x32xf32>
    %158 = arith.truncf %157 : vector<2x8x32xf32> to vector<2x8x32xbf16>
    %159 = vector.extract_strided_slice %154 {offsets = [0, 0, 0], sizes = [2, 8, 8], strides = [1, 1, 1]} : vector<2x8x32xbf16> to vector<2x8x8xbf16>
    %160 = vector.extract_strided_slice %156 {offsets = [0, 0, 0], sizes = [2, 8, 8], strides = [1, 1, 1]} : vector<2x8x32xbf16> to vector<2x8x8xbf16>
    "tpu.trace_start"() <{level = 10 : i32, message = "bqd,bkd->bqk"}> : () -> ()
    %cst_63 = arith.constant dense<0.000000e+00> : vector<2x8x8xf32>
    %161 = tpu.matmul %159, %160, %cst_63 {dimension_numbers = #tpu.dot_dimension_numbers<[2], [2], [1], [1], [0, 0, 0, 1, 1, 1], [0], [0]>} : vector<2x8x8xbf16>, vector<2x8x8xbf16>, vector<2x8x8xf32> -> vector<2x8x8xf32>
    "tpu.trace_stop"() : () -> ()
    %c0_64 = arith.constant 0 : index
    %c0_65 = arith.constant 0 : index
    %c0_66 = arith.constant 0 : index
    %c0_67 = arith.constant 0 : index
    %162 = vector.load %arg3[%c0_64, %c0_65, %c0_66, %c0_67] : memref<4x2x8x8xf32, #tpu.memory_space<vmem>>, vector<1x2x8x8xf32>
    %163 = vector.shape_cast %162 : vector<1x2x8x8xf32> to vector<2x8x8xf32>
    %164 = arith.addf %161, %163 : vector<2x8x8xf32>
    %cst_68 = arith.constant dense<0xFF800000> : vector<2x8xf32>
    %165 = vector.multi_reduction <maximumf>, %164, %cst_68 [2] : vector<2x8x8xf32> to vector<2x8xf32>
    %166 = vector.shape_cast %165 : vector<2x8xf32> to vector<2x8x1xf32>
    %167 = vector.broadcast %166 : vector<2x8x1xf32> to vector<2x8x8xf32>
    %168 = arith.subf %164, %167 : vector<2x8x8xf32>
    %169 = math.exp %168 : vector<2x8x8xf32>
    %cst_69 = arith.constant dense<0.000000e+00> : vector<2x8xf32>
    %170 = vector.multi_reduction <add>, %169, %cst_69 [2] : vector<2x8x8xf32> to vector<2x8xf32>
    %171 = vector.shape_cast %170 : vector<2x8xf32> to vector<2x8x1xf32>
    %172 = tpu.reciprocal %171 {approx = true} : vector<2x8x1xf32> -> vector<2x8x1xf32>
    %173 = vector.broadcast %172 : vector<2x8x1xf32> to vector<2x8x8xf32>
    %174 = arith.mulf %169, %173 : vector<2x8x8xf32>
    %175 = arith.truncf %174 : vector<2x8x8xf32> to vector<2x8x8xbf16>
    %176 = vector.extract_strided_slice %158 {offsets = [0, 0, 0], sizes = [2, 8, 8], strides = [1, 1, 1]} : vector<2x8x32xbf16> to vector<2x8x8xbf16>
    "tpu.trace_start"() <{level = 10 : i32, message = "bqk,bkd->bqd"}> : () -> ()
    %cst_70 = arith.constant dense<0.000000e+00> : vector<2x8x8xf32>
    %177 = tpu.matmul %175, %176, %cst_70 {dimension_numbers = #tpu.dot_dimension_numbers<[2], [1], [1], [2], [0, 0, 0, 1, 1, 2], [0], [0]>} : vector<2x8x8xbf16>, vector<2x8x8xbf16>, vector<2x8x8xf32> -> vector<2x8x8xf32>
    "tpu.trace_stop"() : () -> ()
    %178 = vector.extract_strided_slice %154 {offsets = [0, 0, 8], sizes = [2, 8, 8], strides = [1, 1, 1]} : vector<2x8x32xbf16> to vector<2x8x8xbf16>
    %179 = vector.extract_strided_slice %156 {offsets = [0, 0, 8], sizes = [2, 8, 8], strides = [1, 1, 1]} : vector<2x8x32xbf16> to vector<2x8x8xbf16>
    "tpu.trace_start"() <{level = 10 : i32, message = "bqd,bkd->bqk"}> : () -> ()
    %cst_71 = arith.constant dense<0.000000e+00> : vector<2x8x8xf32>
    %180 = tpu.matmul %178, %179, %cst_71 {dimension_numbers = #tpu.dot_dimension_numbers<[2], [2], [1], [1], [0, 0, 0, 1, 1, 1], [0], [0]>} : vector<2x8x8xbf16>, vector<2x8x8xbf16>, vector<2x8x8xf32> -> vector<2x8x8xf32>
    "tpu.trace_stop"() : () -> ()
    %c1_72 = arith.constant 1 : index
    %c0_73 = arith.constant 0 : index
    %c0_74 = arith.constant 0 : index
    %c0_75 = arith.constant 0 : index
    %181 = vector.load %arg3[%c1_72, %c0_73, %c0_74, %c0_75] : memref<4x2x8x8xf32, #tpu.memory_space<vmem>>, vector<1x2x8x8xf32>
    %182 = vector.shape_cast %181 : vector<1x2x8x8xf32> to vector<2x8x8xf32>
    %183 = arith.addf %180, %182 : vector<2x8x8xf32>
    %cst_76 = arith.constant dense<0xFF800000> : vector<2x8xf32>
    %184 = vector.multi_reduction <maximumf>, %183, %cst_76 [2] : vector<2x8x8xf32> to vector<2x8xf32>
    %185 = vector.shape_cast %184 : vector<2x8xf32> to vector<2x8x1xf32>
    %186 = vector.broadcast %185 : vector<2x8x1xf32> to vector<2x8x8xf32>
    %187 = arith.subf %183, %186 : vector<2x8x8xf32>
    %188 = math.exp %187 : vector<2x8x8xf32>
    %cst_77 = arith.constant dense<0.000000e+00> : vector<2x8xf32>
    %189 = vector.multi_reduction <add>, %188, %cst_77 [2] : vector<2x8x8xf32> to vector<2x8xf32>
    %190 = vector.shape_cast %189 : vector<2x8xf32> to vector<2x8x1xf32>
    %191 = tpu.reciprocal %190 {approx = true} : vector<2x8x1xf32> -> vector<2x8x1xf32>
    %192 = vector.broadcast %191 : vector<2x8x1xf32> to vector<2x8x8xf32>
    %193 = arith.mulf %188, %192 : vector<2x8x8xf32>
    %194 = arith.truncf %193 : vector<2x8x8xf32> to vector<2x8x8xbf16>
    %195 = vector.extract_strided_slice %158 {offsets = [0, 0, 8], sizes = [2, 8, 8], strides = [1, 1, 1]} : vector<2x8x32xbf16> to vector<2x8x8xbf16>
    "tpu.trace_start"() <{level = 10 : i32, message = "bqk,bkd->bqd"}> : () -> ()
    %cst_78 = arith.constant dense<0.000000e+00> : vector<2x8x8xf32>
    %196 = tpu.matmul %194, %195, %cst_78 {dimension_numbers = #tpu.dot_dimension_numbers<[2], [1], [1], [2], [0, 0, 0, 1, 1, 2], [0], [0]>} : vector<2x8x8xbf16>, vector<2x8x8xbf16>, vector<2x8x8xf32> -> vector<2x8x8xf32>
    "tpu.trace_stop"() : () -> ()
    %197 = vector.extract_strided_slice %154 {offsets = [0, 0, 16], sizes = [2, 8, 8], strides = [1, 1, 1]} : vector<2x8x32xbf16> to vector<2x8x8xbf16>
    %198 = vector.extract_strided_slice %156 {offsets = [0, 0, 16], sizes = [2, 8, 8], strides = [1, 1, 1]} : vector<2x8x32xbf16> to vector<2x8x8xbf16>
    "tpu.trace_start"() <{level = 10 : i32, message = "bqd,bkd->bqk"}> : () -> ()
    %cst_79 = arith.constant dense<0.000000e+00> : vector<2x8x8xf32>
    %199 = tpu.matmul %197, %198, %cst_79 {dimension_numbers = #tpu.dot_dimension_numbers<[2], [2], [1], [1], [0, 0, 0, 1, 1, 1], [0], [0]>} : vector<2x8x8xbf16>, vector<2x8x8xbf16>, vector<2x8x8xf32> -> vector<2x8x8xf32>
    "tpu.trace_stop"() : () -> ()
    %c2_80 = arith.constant 2 : index
    %c0_81 = arith.constant 0 : index
    %c0_82 = arith.constant 0 : index
    %c0_83 = arith.constant 0 : index
    %200 = vector.load %arg3[%c2_80, %c0_81, %c0_82, %c0_83] : memref<4x2x8x8xf32, #tpu.memory_space<vmem>>, vector<1x2x8x8xf32>
    %201 = vector.shape_cast %200 : vector<1x2x8x8xf32> to vector<2x8x8xf32>
    %202 = arith.addf %199, %201 : vector<2x8x8xf32>
    %cst_84 = arith.constant dense<0xFF800000> : vector<2x8xf32>
    %203 = vector.multi_reduction <maximumf>, %202, %cst_84 [2] : vector<2x8x8xf32> to vector<2x8xf32>
    %204 = vector.shape_cast %203 : vector<2x8xf32> to vector<2x8x1xf32>
    %205 = vector.broadcast %204 : vector<2x8x1xf32> to vector<2x8x8xf32>
    %206 = arith.subf %202, %205 : vector<2x8x8xf32>
    %207 = math.exp %206 : vector<2x8x8xf32>
    %cst_85 = arith.constant dense<0.000000e+00> : vector<2x8xf32>
    %208 = vector.multi_reduction <add>, %207, %cst_85 [2] : vector<2x8x8xf32> to vector<2x8xf32>
    %209 = vector.shape_cast %208 : vector<2x8xf32> to vector<2x8x1xf32>
    %210 = tpu.reciprocal %209 {approx = true} : vector<2x8x1xf32> -> vector<2x8x1xf32>
    %211 = vector.broadcast %210 : vector<2x8x1xf32> to vector<2x8x8xf32>
    %212 = arith.mulf %207, %211 : vector<2x8x8xf32>
    %213 = arith.truncf %212 : vector<2x8x8xf32> to vector<2x8x8xbf16>
    %214 = vector.extract_strided_slice %158 {offsets = [0, 0, 16], sizes = [2, 8, 8], strides = [1, 1, 1]} : vector<2x8x32xbf16> to vector<2x8x8xbf16>
    "tpu.trace_start"() <{level = 10 : i32, message = "bqk,bkd->bqd"}> : () -> ()
    %cst_86 = arith.constant dense<0.000000e+00> : vector<2x8x8xf32>
    %215 = tpu.matmul %213, %214, %cst_86 {dimension_numbers = #tpu.dot_dimension_numbers<[2], [1], [1], [2], [0, 0, 0, 1, 1, 2], [0], [0]>} : vector<2x8x8xbf16>, vector<2x8x8xbf16>, vector<2x8x8xf32> -> vector<2x8x8xf32>
    "tpu.trace_stop"() : () -> ()
    %216 = vector.extract_strided_slice %154 {offsets = [0, 0, 24], sizes = [2, 8, 8], strides = [1, 1, 1]} : vector<2x8x32xbf16> to vector<2x8x8xbf16>
    %217 = vector.extract_strided_slice %156 {offsets = [0, 0, 24], sizes = [2, 8, 8], strides = [1, 1, 1]} : vector<2x8x32xbf16> to vector<2x8x8xbf16>
    "tpu.trace_start"() <{level = 10 : i32, message = "bqd,bkd->bqk"}> : () -> ()
    %cst_87 = arith.constant dense<0.000000e+00> : vector<2x8x8xf32>
    %218 = tpu.matmul %216, %217, %cst_87 {dimension_numbers = #tpu.dot_dimension_numbers<[2], [2], [1], [1], [0, 0, 0, 1, 1, 1], [0], [0]>} : vector<2x8x8xbf16>, vector<2x8x8xbf16>, vector<2x8x8xf32> -> vector<2x8x8xf32>
    "tpu.trace_stop"() : () -> ()
    %c3_88 = arith.constant 3 : index
    %c0_89 = arith.constant 0 : index
    %c0_90 = arith.constant 0 : index
    %c0_91 = arith.constant 0 : index
    %219 = vector.load %arg3[%c3_88, %c0_89, %c0_90, %c0_91] : memref<4x2x8x8xf32, #tpu.memory_space<vmem>>, vector<1x2x8x8xf32>
    %220 = vector.shape_cast %219 : vector<1x2x8x8xf32> to vector<2x8x8xf32>
    %221 = arith.addf %218, %220 : vector<2x8x8xf32>
    %cst_92 = arith.constant dense<0xFF800000> : vector<2x8xf32>
    %222 = vector.multi_reduction <maximumf>, %221, %cst_92 [2] : vector<2x8x8xf32> to vector<2x8xf32>
    %223 = vector.shape_cast %222 : vector<2x8xf32> to vector<2x8x1xf32>
    %224 = vector.broadcast %223 : vector<2x8x1xf32> to vector<2x8x8xf32>
    %225 = arith.subf %221, %224 : vector<2x8x8xf32>
    %226 = math.exp %225 : vector<2x8x8xf32>
    %cst_93 = arith.constant dense<0.000000e+00> : vector<2x8xf32>
    %227 = vector.multi_reduction <add>, %226, %cst_93 [2] : vector<2x8x8xf32> to vector<2x8xf32>
    %228 = vector.shape_cast %227 : vector<2x8xf32> to vector<2x8x1xf32>
    %229 = tpu.reciprocal %228 {approx = true} : vector<2x8x1xf32> -> vector<2x8x1xf32>
    %230 = vector.broadcast %229 : vector<2x8x1xf32> to vector<2x8x8xf32>
    %231 = arith.mulf %226, %230 : vector<2x8x8xf32>
    %232 = arith.truncf %231 : vector<2x8x8xf32> to vector<2x8x8xbf16>
    %233 = vector.extract_strided_slice %158 {offsets = [0, 0, 24], sizes = [2, 8, 8], strides = [1, 1, 1]} : vector<2x8x32xbf16> to vector<2x8x8xbf16>
    "tpu.trace_start"() <{level = 10 : i32, message = "bqk,bkd->bqd"}> : () -> ()
    %cst_94 = arith.constant dense<0.000000e+00> : vector<2x8x8xf32>
    %234 = tpu.matmul %232, %233, %cst_94 {dimension_numbers = #tpu.dot_dimension_numbers<[2], [1], [1], [2], [0, 0, 0, 1, 1, 2], [0], [0]>} : vector<2x8x8xbf16>, vector<2x8x8xbf16>, vector<2x8x8xf32> -> vector<2x8x8xf32>
    "tpu.trace_stop"() : () -> ()
    %235 = tpu.concatenate %177, %196, %215, %234 in 2 : vector<2x8x8xf32>, vector<2x8x8xf32>, vector<2x8x8xf32>, vector<2x8x8xf32> -> vector<2x8x32xf32>
    %236 = vector.shape_cast %235 : vector<2x8x32xf32> to vector<16x32xf32>
    %237 = arith.truncf %236 : vector<16x32xf32> to vector<16x32xbf16>
    %cst_95 = arith.constant dense<0.000000e+00> : vector<16x32xf32>
    %238 = tpu.matmul %237, %152, %cst_95 {dimension_numbers = #tpu.dot_dimension_numbers<[1], [0], [0], [1], [0, 0, 1, 1], [], []>} : vector<16x32xbf16>, vector<32x32xbf16>, vector<16x32xf32> -> vector<16x32xf32>
    %239 = arith.addf %118, %238 : vector<16x32xf32>
    %c0_96 = arith.constant 0 : index
    %c0_97 = arith.constant 0 : index
    %240 = vector.load %arg13[%c0_96, %c0_97] : memref<1x32xf32, #tpu.memory_space<vmem>>, vector<1x32xf32>
    %c0_98 = arith.constant 0 : index
    %c0_99 = arith.constant 0 : index
    %241 = vector.load %arg14[%c0_98, %c0_99] : memref<1x32xf32, #tpu.memory_space<vmem>>, vector<1x32xf32>
    %cst_100 = arith.constant dense<0.000000e+00> : vector<16xf32>
    %242 = vector.multi_reduction <add>, %239, %cst_100 [1] : vector<16x32xf32> to vector<16xf32>
    %243 = vector.shape_cast %242 : vector<16xf32> to vector<16x1xf32>
    %cst_101 = arith.constant 3.200000e+01 : f32
    %244 = vector.broadcast %cst_101 : f32 to vector<16x1xf32>
    %245 = arith.divf %243, %244 : vector<16x1xf32>
    %246 = vector.broadcast %245 : vector<16x1xf32> to vector<16x32xf32>
    %247 = arith.subf %239, %246 : vector<16x32xf32>
    %248 = arith.mulf %247, %247 : vector<16x32xf32>
    %cst_102 = arith.constant dense<0.000000e+00> : vector<16xf32>
    %249 = vector.multi_reduction <add>, %248, %cst_102 [1] : vector<16x32xf32> to vector<16xf32>
    %250 = vector.shape_cast %249 : vector<16xf32> to vector<16x1xf32>
    %cst_103 = arith.constant 3.200000e+01 : f32
    %251 = vector.broadcast %cst_103 : f32 to vector<16x1xf32>
    %252 = arith.divf %250, %251 : vector<16x1xf32>
    %253 = vector.broadcast %245 : vector<16x1xf32> to vector<16x32xf32>
    %254 = arith.subf %239, %253 : vector<16x32xf32>
    %cst_104 = arith.constant 9.99999997E-7 : f32
    %255 = vector.broadcast %cst_104 : f32 to vector<16x1xf32>
    %256 = arith.addf %252, %255 : vector<16x1xf32>
    %257 = math.rsqrt %256 : vector<16x1xf32>
    %258 = vector.broadcast %257 : vector<16x1xf32> to vector<16x32xf32>
    %259 = arith.mulf %254, %258 : vector<16x32xf32>
    %260 = vector.broadcast %240 : vector<1x32xf32> to vector<16x32xf32>
    %261 = arith.mulf %259, %260 : vector<16x32xf32>
    %262 = vector.broadcast %241 : vector<1x32xf32> to vector<16x32xf32>
    %263 = arith.addf %261, %262 : vector<16x32xf32>
    %264 = arith.truncf %263 : vector<16x32xf32> to vector<16x32xbf16>
    %c0_105 = arith.constant 0 : index
    %c0_106 = arith.constant 0 : index
    %265 = vector.load %arg15[%c0_105, %c0_106] : memref<32x128xbf16, #tpu.memory_space<vmem>>, vector<32x128xbf16>
    %cst_107 = arith.constant dense<0.000000e+00> : vector<16x128xf32>
    %266 = tpu.matmul %264, %265, %cst_107 {dimension_numbers = #tpu.dot_dimension_numbers<[1], [0], [0], [1], [0, 0, 1, 1], [], []>} : vector<16x32xbf16>, vector<32x128xbf16>, vector<16x128xf32> -> vector<16x128xf32>
    %267 = vector.extract_strided_slice %266 {offsets = [0, 0], sizes = [16, 64], strides = [1, 1]} : vector<16x128xf32> to vector<16x64xf32>
    %268 = arith.mulf %267, %267 : vector<16x64xf32>
    %269 = arith.mulf %267, %268 : vector<16x64xf32>
    %cst_108 = arith.constant 4.471500e-02 : f32
    %270 = vector.broadcast %cst_108 : f32 to vector<16x64xf32>
    %271 = arith.mulf %270, %269 : vector<16x64xf32>
    %272 = arith.addf %267, %271 : vector<16x64xf32>
    %cst_109 = arith.constant 0.797884583 : f32
    %273 = vector.broadcast %cst_109 : f32 to vector<16x64xf32>
    %274 = arith.mulf %273, %272 : vector<16x64xf32>
    %275 = math.tanh %274 : vector<16x64xf32>
    %cst_110 = arith.constant 1.000000e+00 : f32
    %276 = vector.broadcast %cst_110 : f32 to vector<16x64xf32>
    %277 = arith.addf %276, %275 : vector<16x64xf32>
    %cst_111 = arith.constant 5.000000e-01 : f32
    %278 = vector.broadcast %cst_111 : f32 to vector<16x64xf32>
    %279 = arith.mulf %278, %277 : vector<16x64xf32>
    %280 = arith.mulf %267, %279 : vector<16x64xf32>
    %281 = vector.extract_strided_slice %266 {offsets = [0, 64], sizes = [16, 64], strides = [1, 1]} : vector<16x128xf32> to vector<16x64xf32>
    %282 = arith.mulf %280, %281 : vector<16x64xf32>
    %283 = arith.truncf %282 : vector<16x64xf32> to vector<16x64xbf16>
    %c0_112 = arith.constant 0 : index
    %c0_113 = arith.constant 0 : index
    %284 = vector.load %arg16[%c0_112, %c0_113] : memref<64x32xbf16, #tpu.memory_space<vmem>>, vector<64x32xbf16>
    %cst_114 = arith.constant dense<0.000000e+00> : vector<16x32xf32>
    %285 = tpu.matmul %283, %284, %cst_114 {dimension_numbers = #tpu.dot_dimension_numbers<[1], [0], [0], [1], [0, 0, 1, 1], [], []>} : vector<16x64xbf16>, vector<64x32xbf16>, vector<16x32xf32> -> vector<16x32xf32>
    %286 = arith.addf %239, %285 : vector<16x32xf32>
    %c0_115 = arith.constant 0 : index
    %c0_116 = arith.constant 0 : index
    %287 = vector.load %arg17[%c0_115, %c0_116] : memref<16x32xf32, #tpu.memory_space<vmem>>, vector<16x32xf32>
    tpu.vector_store %arg17[%c0_115, %c0_116], %286 {strides = array<i32>} : memref<16x32xf32, #tpu.memory_space<vmem>>, vector<16x32xf32>,
    return
  }
}

</mosaic_0001>

<llo_original>
// kernel: tpu_custom_call.1
$region0: #{tpu_custom_call.1}
  #allocation0 [shape = 'u32[]', space=smem, size = 0x4, offset = 0x4, fixed_abs, tag = 'smem constant byte address 0x4 - core index']
  #allocation1 [shape = 'u32[72,128]{1,0:T(1,128)}', space=vmem, size = 0x9000, scoped, tag = 'internal scratch']
  %s0 = inlined_call_operand.vmem [shape: f32[16,32], index: 0, kind: input, shape index: {}]
  %s1 = inlined_call_operand.vmem [shape: f32[16,32], index: 1, kind: input, shape index: {}]
  %s2 = inlined_call_operand.hbm [shape: f32[4,2,8,8], index: 2, kind: input, shape index: {}]
  %s3 = inlined_call_operand.hbm [shape: f32[4,2,8,8], index: 3, kind: input, shape index: {}]
  %s4 = inlined_call_operand.vmem [shape: f32[1,32], index: 4, kind: input, shape index: {}]
  %s5 = inlined_call_operand.vmem [shape: f32[1,32], index: 5, kind: input, shape index: {}]
  %s6 = inlined_call_operand.vmem [shape: bf16[32,96], index: 6, kind: input, shape index: {}]
  %s7 = inlined_call_operand.hbm [shape: bf16[32,32], index: 7, kind: input, shape index: {}]
  %s8 = inlined_call_operand.vmem [shape: f32[1,32], index: 8, kind: input, shape index: {}]
  %s9 = inlined_call_operand.vmem [shape: f32[1,32], index: 9, kind: input, shape index: {}]
  %s10 = inlined_call_operand.hbm [shape: bf16[32,32], index: 10, kind: input, shape index: {}]
  %s11 = inlined_call_operand.hbm [shape: bf16[32,64], index: 11, kind: input, shape index: {}]
  %s12 = inlined_call_operand.hbm [shape: bf16[32,32], index: 12, kind: input, shape index: {}]
  %s13 = inlined_call_operand.vmem [shape: f32[1,32], index: 13, kind: input, shape index: {}]
  %s14 = inlined_call_operand.vmem [shape: f32[1,32], index: 14, kind: input, shape index: {}]
  %s15 = inlined_call_operand.hbm [shape: bf16[32,128], index: 15, kind: input, shape index: {}]
  %s16 = inlined_call_operand.vmem [shape: bf16[64,32], index: 16, kind: input, shape index: {}]
  %s17 = inlined_call_operand.hbm [shape: f32[16,32], index: 17, kind: output, shape index: {}]
  %s18 = sld [smem:[#allocation0]]
  $region106: #{tpu_custom_call.1} parent=0
    _
  %s20 = ssub.s32 1, %s18
  %s21 = scalar_select 0, %s20, %s18
  $region1: #{tpu_custom_call.1} parent=0
    #allocation2 [shape = 'u8[32768]{0}', space=vmem, size = 0x8000, scoped, tag = 'input window, operand 2, single buffered']
    #allocation3 [shape = 's32[1]{0}', space=sflag, size = 0x4, scoped, tag = 'scoped memory for tpu_custom_call.1']
    #allocation4 [shape = 's32[1]{0}', space=sflag, size = 0x4, scoped, tag = 'scoped memory for tpu_custom_call.1']
    #allocation5 [shape = 'u8[32768]{0}', space=vmem, size = 0x8000, scoped, tag = 'input window, operand 3, single buffered']
    #allocation6 [shape = 's32[1]{0}', space=sflag, size = 0x4, scoped, tag = 'scoped memory for tpu_custom_call.1']
    #allocation7 [shape = 'u8[8192]{0}', space=vmem, size = 0x2000, scoped, tag = 'input window, operand 7, single buffered']
    #allocation8 [shape = 'u8[8192]{0}', space=vmem, size = 0x2000, scoped, tag = 'input window, operand 10, single buffered']
    #allocation9 [shape = 's32[1]{0}', space=sflag, size = 0x4, scoped, tag = 'scoped memory for tpu_custom_call.1']
    #allocation10 [shape = 'u8[8192]{0}', space=vmem, size = 0x2000, scoped, tag = 'input window, operand 11, single buffered']
    #allocation11 [shape = 'u8[8192]{0}', space=vmem, size = 0x2000, scoped, tag = 'input window, operand 12, single buffered']
    #allocation12 [shape = 's32[1]{0}', space=sflag, size = 0x4, scoped, tag = 'scoped memory for tpu_custom_call.1']
    #allocation13 [shape = 'u8[8192]{0}', space=vmem, size = 0x2000, scoped, tag = 'input window, operand 15, single buffered']
    #allocation14 [shape = 'u8[8192]{0}', space=vmem, size = 0x2000, scoped, tag = 'output window, operand 0, single buffered']
    %22 = vsyncpa [#allocation3], 0
    %23 = vsyncpa [#allocation6], 0
    %24 = vsyncpa [#allocation9], 0
    %25 = vsyncpa [#allocation12], 0
    %26 = vsyncpa [#allocation4], 0
    // Predicated region
    $region2: #{tpu_custom_call.1} parent=1 // pred_check
      _
    $region3: #{tpu_custom_call.1} parent=1 // pred_check_branch
      %28 = sbr.rel (0) target = $region5
    $region4: #{tpu_custom_call.1} parent=1 // pred_region
      _
    $region5: #{tpu_custom_call.1} parent=1 // pred_fallthru
      _
    // Predicated region
    $region6: #{tpu_custom_call.1} parent=1 // pred_check
      _
    $region7: #{tpu_custom_call.1} parent=1 // pred_check_branch
      %30 = sbr.rel (0) target = $region9
    $region8: #{tpu_custom_call.1} parent=1 // pred_region
      _
    $region9: #{tpu_custom_call.1} parent=1 // pred_fallthru
      _
    // Predicated region
    $region10: #{tpu_custom_call.1} parent=1 // pred_check
      _
    $region11: #{tpu_custom_call.1} parent=1 // pred_check_branch
      %32 = sbr.rel (0) target = $region13
    $region12: #{tpu_custom_call.1} parent=1 // pred_region
      %34 = vsyncadd [#allocation3], 0
      %s35 = sshll.u32 %s2, 4
      %s36 = int_to_ptr.hbm [resolvable:$true] %s35
      %s37 = sshll.u32 [#allocation2], 4
      %s38 = int_to_ptr.vmem [resolvable:$true] %s37
      %43 = dma.hbm_to_vmem [thread:$0]  %s36, 1024, %s38, [#allocation3], 128, 128, 8
    $region13: #{tpu_custom_call.1} parent=1 // pred_fallthru
      _
    // Predicated region
    $region14: #{tpu_custom_call.1} parent=1 // pred_check
      _
    $region15: #{tpu_custom_call.1} parent=1 // pred_check_branch
      %45 = sbr.rel (0) target = $region17
    $region16: #{tpu_custom_call.1} parent=1 // pred_region
      %47 = vsyncadd [#allocation6], 0
      %s48 = sshll.u32 %s3, 4
      %s49 = int_to_ptr.hbm [resolvable:$true] %s48
      %s50 = sshll.u32 [#allocation5], 4
      %s51 = int_to_ptr.vmem [resolvable:$true] %s50
      %56 = dma.hbm_to_vmem [thread:$0]  %s49, 1024, %s51, [#allocation6], 128, 128, 8
    $region17: #{tpu_custom_call.1} parent=1 // pred_fallthru
      _
    // Predicated region
    $region18: #{tpu_custom_call.1} parent=1 // pred_check
      _
    $region19: #{tpu_custom_call.1} parent=1 // pred_check_branch
      %58 = sbr.rel (0) target = $region21
    $region20: #{tpu_custom_call.1} parent=1 // pred_region
      _
    $region21: #{tpu_custom_call.1} parent=1 // pred_fallthru
      _
    // Predicated region
    $region22: #{tpu_custom_call.1} parent=1 // pred_check
      _
    $region23: #{tpu_custom_call.1} parent=1 // pred_check_branch
      %60 = sbr.rel (0) target = $region25
    $region24: #{tpu_custom_call.1} parent=1 // pred_region
      _
    $region25: #{tpu_custom_call.1} parent=1 // pred_fallthru
      _
    // Predicated region
    $region26: #{tpu_custom_call.1} parent=1 // pred_check
      _
    $region27: #{tpu_custom_call.1} parent=1 // pred_check_branch
      %62 = sbr.rel (0) target = $region29
    $region28: #{tpu_custom_call.1} parent=1 // pred_region
      _
    $region29: #{tpu_custom_call.1} parent=1 // pred_fallthru
      _
    // Predicated region
    $region30: #{tpu_custom_call.1} parent=1 // pred_check
      _
    $region31: #{tpu_custom_call.1} parent=1 // pred_check_branch
      %64 = sbr.rel (0) target = $region33
    $region32: #{tpu_custom_call.1} parent=1 // pred_region
      %66 = vsyncadd [#allocation6], 0
      %s67 = sshll.u32 %s7, 4
      %s68 = int_to_ptr.hbm [resolvable:$true] %s67
      %s69 = sshll.u32 [#allocation7], 4
      %s70 = int_to_ptr.vmem [resolvable:$true] %s69
      %75 = dma.hbm_to_vmem [thread:$0]  %s68, 256, %s70, [#allocation6], 64, 64, 4
    $region33: #{tpu_custom_call.1} parent=1 // pred_fallthru
      _
    // Predicated region
    $region34: #{tpu_custom_call.1} parent=1 // pred_check
      _
    $region35: #{tpu_custom_call.1} parent=1 // pred_check_branch
      %77 = sbr.rel (0) target = $region37
    $region36: #{tpu_custom_call.1} parent=1 // pred_region
      _
    $region37: #{tpu_custom_call.1} parent=1 // pred_fallthru
      _
    // Predicated region
    $region38: #{tpu_custom_call.1} parent=1 // pred_check
      _
    $region39: #{tpu_custom_call.1} parent=1 // pred_check_branch
      %79 = sbr.rel (0) target = $region41
    $region40: #{tpu_custom_call.1} parent=1 // pred_region
      _
    $region41: #{tpu_custom_call.1} parent=1 // pred_fallthru
      _
    // Predicated region
    $region42: #{tpu_custom_call.1} parent=1 // pred_check
      _
    $region43: #{tpu_custom_call.1} parent=1 // pred_check_branch
      %81 = sbr.rel (0) target = $region45
    $region44: #{tpu_custom_call.1} parent=1 // pred_region
      %83 = vsyncadd [#allocation9], 0
      %s84 = sshll.u32 %s10, 4
      %s85 = int_to_ptr.hbm [resolvable:$true] %s84
      %s86 = sshll.u32 [#allocation8], 4
      %s87 = int_to_ptr.vmem [resolvable:$true] %s86
      %92 = dma.hbm_to_vmem [thread:$0]  %s85, 256, %s87, [#allocation9], 64, 64, 4
    $region45: #{tpu_custom_call.1} parent=1 // pred_fallthru
      _
    // Predicated region
    $region46: #{tpu_custom_call.1} parent=1 // pred_check
      _
    $region47: #{tpu_custom_call.1} parent=1 // pred_check_branch
      %94 = sbr.rel (0) target = $region49
    $region48: #{tpu_custom_call.1} parent=1 // pred_region
      %96 = vsyncadd [#allocation9], 0
      %s97 = sshll.u32 %s11, 4
      %s98 = int_to_ptr.hbm [resolvable:$true] %s97
      %s99 = sshll.u32 [#allocation10], 4
      %s100 = int_to_ptr.vmem [resolvable:$true] %s99
      %105 = dma.hbm_to_vmem [thread:$0]  %s98, 256, %s100, [#allocation9], 64, 64, 4
    $region49: #{tpu_custom_call.1} parent=1 // pred_fallthru
      _
    // Predicated region
    $region50: #{tpu_custom_call.1} parent=1 // pred_check
      _
    $region51: #{tpu_custom_call.1} parent=1 // pred_check_branch
      %107 = sbr.rel (0) target = $region53
    $region52: #{tpu_custom_call.1} parent=1 // pred_region
      %109 = vsyncadd [#allocation12], 0
      %s110 = sshll.u32 %s12, 4
      %s111 = int_to_ptr.hbm [resolvable:$true] %s110
      %s112 = sshll.u32 [#allocation11], 4
      %s113 = int_to_ptr.vmem [resolvable:$true] %s112
      %118 = dma.hbm_to_vmem [thread:$0]  %s111, 256, %s113, [#allocation12], 64, 64, 4
    $region53: #{tpu_custom_call.1} parent=1 // pred_fallthru
      _
    // Predicated region
    $region54: #{tpu_custom_call.1} parent=1 // pred_check
      _
    $region55: #{tpu_custom_call.1} parent=1 // pred_check_branch
      %120 = sbr.rel (0) target = $region57
    $region56: #{tpu_custom_call.1} parent=1 // pred_region
      _
    $region57: #{tpu_custom_call.1} parent=1 // pred_fallthru
      _
    // Predicated region
    $region58: #{tpu_custom_call.1} parent=1 // pred_check
      _
    $region59: #{tpu_custom_call.1} parent=1 // pred_check_branch
      %122 = sbr.rel (0) target = $region61
    $region60: #{tpu_custom_call.1} parent=1 // pred_region
      _
    $region61: #{tpu_custom_call.1} parent=1 // pred_fallthru
      _
    // Predicated region
    $region62: #{tpu_custom_call.1} parent=1 // pred_check
      _
    $region63: #{tpu_custom_call.1} parent=1 // pred_check_branch
      %124 = sbr.rel (0) target = $region65
    $region64: #{tpu_custom_call.1} parent=1 // pred_region
      %126 = vsyncadd [#allocation12], 0
      %s127 = sshll.u32 %s15, 4
      %s128 = int_to_ptr.hbm [resolvable:$true] %s127
      %s129 = sshll.u32 [#allocation13], 4
      %s130 = int_to_ptr.vmem [resolvable:$true] %s129
      %135 = dma.hbm_to_vmem [thread:$0]  %s128, 256, %s130, [#allocation12], 64, 64, 4
    $region65: #{tpu_custom_call.1} parent=1 // pred_fallthru
      _
    // Predicated region
    $region66: #{tpu_custom_call.1} parent=1 // pred_check
      _
    $region67: #{tpu_custom_call.1} parent=1 // pred_check_branch
      %137 = sbr.rel (0) target = $region69
    $region68: #{tpu_custom_call.1} parent=1 // pred_region
      _
    $region69: #{tpu_custom_call.1} parent=1 // pred_fallthru
      _
    // Predicated region
    $region70: #{tpu_custom_call.1} parent=1 // pred_check
      _
    $region71: #{tpu_custom_call.1} parent=1 // pred_check_branch
      %139 = sbr.rel (0) target = $region73
    $region72: #{tpu_custom_call.1} parent=1 // pred_region
      %141 = dma.done [#allocation3], 1024
    $region73: #{tpu_custom_call.1} parent=1 // pred_fallthru
      _
    // Predicated region
    $region74: #{tpu_custom_call.1} parent=1 // pred_check
      _
    $region75: #{tpu_custom_call.1} parent=1 // pred_check_branch
      %143 = sbr.rel (0) target = $region77
    $region76: #{tpu_custom_call.1} parent=1 // pred_region
      %145 = dma.done [#allocation6], 1024
    $region77: #{tpu_custom_call.1} parent=1 // pred_fallthru
      _
    // Predicated region
    $region78: #{tpu_custom_call.1} parent=1 // pred_check
      _
    $region79: #{tpu_custom_call.1} parent=1 // pred_check_branch
      %147 = sbr.rel (0) target = $region81
    $region80: #{tpu_custom_call.1} parent=1 // pred_region
      %149 = dma.done [#allocation6], 256
    $region81: #{tpu_custom_call.1} parent=1 // pred_fallthru
      _
    // Predicated region
    $region82: #{tpu_custom_call.1} parent=1 // pred_check
      _
    $region83: #{tpu_custom_call.1} parent=1 // pred_check_branch
      %151 = sbr.rel (0) target = $region85
    $region84: #{tpu_custom_call.1} parent=1 // pred_region
      %153 = dma.done [#allocation9], 256
    $region85: #{tpu_custom_call.1} parent=1 // pred_fallthru
      _
    // Predicated region
    $region86: #{tpu_custom_call.1} parent=1 // pred_check
      _
    $region87: #{tpu_custom_call.1} parent=1 // pred_check_branch
      %155 = sbr.rel (0) target = $region89
    $region88: #{tpu_custom_call.1} parent=1 // pred_region
      %157 = dma.done [#allocation9], 256
    $region89: #{tpu_custom_call.1} parent=1 // pred_fallthru
      _
    // Predicated region
    $region90: #{tpu_custom_call.1} parent=1 // pred_check
      _
    $region91: #{tpu_custom_call.1} parent=1 // pred_check_branch
      %159 = sbr.rel (0) target = $region93
    $region92: #{tpu_custom_call.1} parent=1 // pred_region
      %161 = dma.done [#allocation12], 256
    $region93: #{tpu_custom_call.1} parent=1 // pred_fallthru
      _
    // Predicated region
    $region94: #{tpu_custom_call.1} parent=1 // pred_check
      _
    $region95: #{tpu_custom_call.1} parent=1 // pred_check_branch
      %163 = sbr.rel (0) target = $region97
    $region96: #{tpu_custom_call.1} parent=1 // pred_region
      %165 = dma.done [#allocation12], 256
    $region97: #{tpu_custom_call.1} parent=1 // pred_fallthru
      _
    %v167 = vld [vmem:[%s0] sm:$0xff]
    %v168 = vld [vmem:[%s0 + $0x8] sm:$0xff]
    %v169 = vld [vmem:[%s4] sm:$0x1]
    %v170 = vld [vmem:[%s5] sm:$0x1]
    %vm171 = vcmask 261120
    %v172 = vsel %vm171, %v167, 0.0
    %173 = vadd.xlane.f32.xlu0 %v172
    %v174 = vpop.xlane.xlu0 %173
    %v175 = vsel %vm171, %v168, 0.0
    %176 = vadd.xlane.f32.xlu0 %v175
    %v177 = vpop.xlane.xlu0 %176
    %v178 = vrcp.pop 32.0
    %v179 = vmul.f32 32.0, %v178
    %v180 = vsub.f32 1.0, %v179
    %v181 = vmul.f32 %v178, %v180
    %v182 = vadd.f32 %v178, %v181
    %vm183 = vweird.f32 %v178
    %v184 = vsel %vm183, %v178, %v182
    %v185 = vmul.f32 %v174, %v184
    %v186 = vmul.f32 %v177, %v184
    %v187 = vsub.f32 %v167, %v185
    %v188 = vsub.f32 %v168, %v186
    %v189 = vmul.f32 %v187, %v187
    %v190 = vmul.f32 %v188, %v188
    %v191 = vsel %vm171, %v189, 0.0
    %192 = vadd.xlane.f32.xlu0 %v191
    %v193 = vpop.xlane.xlu0 %192
    %v194 = vsel %vm171, %v190, 0.0
    %195 = vadd.xlane.f32.xlu0 %v194
    %v196 = vpop.xlane.xlu0 %195
    %v197 = vmul.f32 %v193, %v184
    %v198 = vmul.f32 %v196, %v184
    %v199 = vadd.f32 %v197, 1e-06
    %v200 = vadd.f32 %v198, 1e-06
    %v201 = vrsqrt.pop %v199
    %v202 = vmul.f32 %v201, %v199
    %v203 = vmul.f32 %v202, %v201
    %v204 = vmul.f32 0.5, %v203
    %v205 = vsub.f32 1.5, %v204
    %v206 = vmul.f32 %v201, %v205
    %vm207 = vweird.f32 %v199
    %vm208 = vweird.f32 %v201
    %vm209 = vmor %vm207, %vm208
    %v210 = vsel %vm209, %v201, %v206
    %v211 = vrsqrt.pop %v200
    %v212 = vmul.f32 %v211, %v200
    %v213 = vmul.f32 %v212, %v211
    %v214 = vmul.f32 0.5, %v213
    %v215 = vsub.f32 1.5, %v214
    %v216 = vmul.f32 %v211, %v215
    %vm217 = vweird.f32 %v200
    %vm218 = vweird.f32 %v211
    %vm219 = vmor %vm217, %vm218
    %v220 = vsel %vm219, %v211, %v216
    %v221 = vmul.f32 %v187, %v210
    %v222 = vmul.f32 %v188, %v220
    %v224 = vperm.slane %v169, 0
    %v226 = vmul.f32 %v221, %v224
    %v227 = vmul.f32 %v222, %v224
    %v229 = vperm.slane %v170, 0
    %v231 = vadd.f32 %v226, %v229
    %v232 = vadd.f32 %v227, %v229
    %v233 = vpack.c.bf16 %v232, %v231
    %v234 = vld [vmem:[%s6] sm:$0xf]
    %v235 = vld [vmem:[%s6 + $0x4] sm:$0xf]
    %v236 = vld [vmem:[%s6 + $0x8] sm:$0xf]
    %v237 = vld [vmem:[%s6 + $0xc] sm:$0xf]
    %v242 = vunpack.c.l.b16 %v234
    %v243 = vunpack.c.l.b16 %v235
    %v244 = vunpack.c.l.b16 %v236
    %v245 = vunpack.c.l.b16 %v237
    %v246 = vpack.c.b16 %v243, %v242
    %v247 = vpack.c.b16 %v245, %v244
    %v251 = vsel %vm171, %v233, 0
    %253 = vmatpush.bf16.msra.mxu0 0
    %254 = vmatpush.bf16.msra.mxu0 0
    %255 = vmatpush.bf16.msra.mxu0 0
    %256 = vmatpush.bf16.msra.mxu0 0
    %257 = vmatpush.bf16.msra.mxu0 0
    %258 = vmatpush.bf16.msra.mxu0 0
    %259 = vmatpush.bf16.msra.mxu0 %v247
    %260 = vmatpush.bf16.msra.mxu0 %v246
    %261 = vmatmul.bf16.gmra.mxu0 %v251
    %v262 = vpop.f32.mrf.mxu0
    %v263 = vadd.f32 0.0, %v262
    %v264 = vpop.f32.mrf.mxu0
    %v265 = vadd.f32 0.0, %v264
    %266 = vdwg.mxu0
    %v267 = vld [vmem:[#allocation7] sm:$0xf]
    %v268 = vld [vmem:[#allocation7 + $0x4] sm:$0xf]
    %v269 = vld [vmem:[#allocation7 + $0x8] sm:$0xf]
    %v270 = vld [vmem:[#allocation7 + $0xc] sm:$0xf]
    %v271 = vpack.c.bf16 %v263, %v263
    %v272 = vpack.c.bf16 %v265, %v265
    %v273 = vld [vmem:[#allocation2] sm:$0xff]
    %v274 = vld [vmem:[#allocation2 + $0x8] sm:$0xff]
    %v276 = vunpack.c.l.b16 %v271
    %v277 = vpack.c.b16 %v276, %v276
    %278 = vrot.lane.b32.xlu0 %v277, 96
    %v279 = vpop.permute.xlu0 %278
    %vm280 = vcmask 64512
    %v282 = vsel %vm280, %v271, 0
    %v285 = vsel %vm280, %v279, 0
    %287 = vmatpush.bf16.xpose.msra.mxu0 0
    %288 = vmatpush.bf16.xpose.msra.mxu0 0
    %289 = vmatpush.bf16.xpose.msra.mxu0 0
    %290 = vmatpush.bf16.xpose.msra.mxu0 0
    %291 = vmatpush.bf16.xpose.msra.mxu0 0
    %292 = vmatpush.bf16.xpose.msra.mxu0 0
    %293 = vmatpush.bf16.xpose.msra.mxu0 0
    %294 = vmatpush.bf16.xpose.msra.mxu0 %v285
    %295 = vmatmul.bf16.gmra.mxu0 %v282
    %v296 = vpop.f32.mrf.mxu0
    %v297 = vadd.f32 %v273, %v296
    %v298 = vpop.f32.mrf.mxu0
    %299 = vdwg.mxu0
    %v301 = vunpack.c.l.b16 %v272
    %v302 = vpack.c.b16 %v301, %v301
    %303 = vrot.lane.b32.xlu0 %v302, 96
    %v304 = vpop.permute.xlu0 %303
    %v306 = vsel %vm280, %v272, 0
    %v309 = vsel %vm280, %v304, 0
    %311 = vmatpush.bf16.xpose.msra.mxu0 0
    %312 = vmatpush.bf16.xpose.msra.mxu0 0
    %313 = vmatpush.bf16.xpose.msra.mxu0 0
    %314 = vmatpush.bf16.xpose.msra.mxu0 0
    %315 = vmatpush.bf16.xpose.msra.mxu0 0
    %316 = vmatpush.bf16.xpose.msra.mxu0 0
    %317 = vmatpush.bf16.xpose.msra.mxu0 0
    %318 = vmatpush.bf16.xpose.msra.mxu0 %v309
    %319 = vmatmul.bf16.gmra.mxu0 %v306
    %v320 = vpop.f32.mrf.mxu0
    %v321 = vadd.f32 %v274, %v320
    %v322 = vpop.f32.mrf.mxu0
    %323 = vdwg.mxu0
    %v324 = vsel %vm280, %v297, -inf
    %325 = vmax.xlane.f32.xlu0 %v324
    %v326 = vpop.xlane.xlu0 %325
    %v327 = vsel %vm280, %v321, -inf
    %328 = vmax.xlane.f32.xlu0 %v327
    %v329 = vpop.xlane.xlu0 %328
    %v330 = vsub.f32 %v297, %v326
    %v331 = vsub.f32 %v321, %v329
    %v332 = vmul.f32 %v330, 1.442695
    %v333 = vpow.pop %v332
    %v334 = vmul.f32 %v331, 1.442695
    %v335 = vpow.pop %v334
    %v336 = vsel %vm280, %v333, 0.0
    %337 = vadd.xlane.f32.xlu0 %v336
    %v338 = vpop.xlane.xlu0 %337
    %v339 = vsel %vm280, %v335, 0.0
    %340 = vadd.xlane.f32.xlu0 %v339
    %v341 = vpop.xlane.xlu0 %340
    %v342 = vrcp.pop %v338
    %v343 = vrcp.pop %v341
    %v344 = vmul.f32 %v333, %v342
    %v345 = vmul.f32 %v335, %v343
    %v346 = vpack.c.bf16 %v344, %v344
    %v347 = vpack.c.bf16 %v345, %v345
    %348 = vrot.lane.b32.xlu0 %v277, 64
    %v349 = vpop.permute.xlu0 %348
    %v351 = vsel %vm280, %v346, 0
    %vm353 = vcmask 1043456
    %v355 = vsel %vm353, %v349, 0
    %357 = vmatpush.bf16.msra.mxu0 0
    %358 = vmatpush.bf16.msra.mxu0 0
    %359 = vmatpush.bf16.msra.mxu0 0
    %360 = vmatpush.bf16.msra.mxu0 0
    %361 = vmatpush.bf16.msra.mxu0 0
    %362 = vmatpush.bf16.msra.mxu0 0
    %363 = vmatpush.bf16.msra.mxu0 0
    %364 = vmatpush.bf16.msra.mxu0 %v355
    %365 = vmatmul.bf16.gmra.mxu0 %v351
    %v366 = vpop.f32.mrf.mxu0
    %v367 = vadd.f32 0.0, %v366
    %v368 = vpop.f32.mrf.mxu0
    %369 = vdwg.mxu0
    %370 = vrot.lane.b32.xlu0 %v302, 64
    %v371 = vpop.permute.xlu0 %370
    %v373 = vsel %vm280, %v347, 0
    %v376 = vsel %vm353, %v371, 0
    %378 = vmatpush.bf16.msra.mxu0 0
    %379 = vmatpush.bf16.msra.mxu0 0
    %380 = vmatpush.bf16.msra.mxu0 0
    %381 = vmatpush.bf16.msra.mxu0 0
    %382 = vmatpush.bf16.msra.mxu0 0
    %383 = vmatpush.bf16.msra.mxu0 0
    %384 = vmatpush.bf16.msra.mxu0 0
    %385 = vmatpush.bf16.msra.mxu0 %v376
    %386 = vmatmul.bf16.gmra.mxu0 %v373
    %v387 = vpop.f32.mrf.mxu0
    %v388 = vadd.f32 0.0, %v387
    %v389 = vpop.f32.mrf.mxu0
    %390 = vdwg.mxu0
    %s391 = scalar_lea.vmem [#allocation2], 16
    %v392 = vld [vmem:[%s391] sm:$0xff]
    %v393 = vld [vmem:[%s391 + $0x8] sm:$0xff]
    %394 = vrot.lane.b32.xlu0 %v277, 120
    %v395 = vpop.permute.xlu0 %394
    %396 = vrot.lane.b32.xlu0 %v277, 88
    %v397 = vpop.permute.xlu0 %396
    %v399 = vsel %vm280, %v395, 0
    %v402 = vsel %vm280, %v397, 0
    %404 = vmatpush.bf16.xpose.msra.mxu0 0
    %405 = vmatpush.bf16.xpose.msra.mxu0 0
    %406 = vmatpush.bf16.xpose.msra.mxu0 0
    %407 = vmatpush.bf16.xpose.msra.mxu0 0
    %408 = vmatpush.bf16.xpose.msra.mxu0 0
    %409 = vmatpush.bf16.xpose.msra.mxu0 0
    %410 = vmatpush.bf16.xpose.msra.mxu0 0
    %411 = vmatpush.bf16.xpose.msra.mxu0 %v402
    %412 = vmatmul.bf16.gmra.mxu0 %v399
    %v413 = vpop.f32.mrf.mxu0
    %v414 = vadd.f32 %v392, %v413
    %v415 = vpop.f32.mrf.mxu0
    %416 = vdwg.mxu0
    %417 = vrot.lane.b32.xlu0 %v302, 120
    %v418 = vpop.permute.xlu0 %417
    %419 = vrot.lane.b32.xlu0 %v302, 88
    %v420 = vpop.permute.xlu0 %419
    %v422 = vsel %vm280, %v418, 0
    %v425 = vsel %vm280, %v420, 0
    %427 = vmatpush.bf16.xpose.msra.mxu0 0
    %428 = vmatpush.bf16.xpose.msra.mxu0 0
    %429 = vmatpush.bf16.xpose.msra.mxu0 0
    %430 = vmatpush.bf16.xpose.msra.mxu0 0
    %431 = vmatpush.bf16.xpose.msra.mxu0 0
    %432 = vmatpush.bf16.xpose.msra.mxu0 0
    %433 = vmatpush.bf16.xpose.msra.mxu0 0
    %434 = vmatpush.bf16.xpose.msra.mxu0 %v425
    %435 = vmatmul.bf16.gmra.mxu0 %v422
    %v436 = vpop.f32.mrf.mxu0
    %v437 = vadd.f32 %v393, %v436
    %v438 = vpop.f32.mrf.mxu0
    %439 = vdwg.mxu0
    %v440 = vsel %vm280, %v414, -inf
    %441 = vmax.xlane.f32.xlu0 %v440
    %v442 = vpop.xlane.xlu0 %441
    %v443 = vsel %vm280, %v437, -inf
    %444 = vmax.xlane.f32.xlu0 %v443
    %v445 = vpop.xlane.xlu0 %444
    %v446 = vsub.f32 %v414, %v442
    %v447 = vsub.f32 %v437, %v445
    %v448 = vmul.f32 %v446, 1.442695
    %v449 = vpow.pop %v448
    %v450 = vmul.f32 %v447, 1.442695
    %v451 = vpow.pop %v450
    %v452 = vsel %vm280, %v449, 0.0
    %453 = vadd.xlane.f32.xlu0 %v452
    %v454 = vpop.xlane.xlu0 %453
    %v455 = vsel %vm280, %v451, 0.0
    %456 = vadd.xlane.f32.xlu0 %v455
    %v457 = vpop.xlane.xlu0 %456
    %v458 = vrcp.pop %v454
    %v459 = vrcp.pop %v457
    %v460 = vmul.f32 %v449, %v458
    %v461 = vmul.f32 %v451, %v459
    %v462 = vpack.c.bf16 %v460, %v460
    %v463 = vpack.c.bf16 %v461, %v461
    %464 = vrot.lane.b32.xlu0 %v277, 56
    %v465 = vpop.permute.xlu0 %464
    %v467 = vsel %vm280, %v462, 0
    %v470 = vsel %vm353, %v465, 0
    %472 = vmatpush.bf16.msra.mxu0 0
    %473 = vmatpush.bf16.msra.mxu0 0
    %474 = vmatpush.bf16.msra.mxu0 0
    %475 = vmatpush.bf16.msra.mxu0 0
    %476 = vmatpush.bf16.msra.mxu0 0
    %477 = vmatpush.bf16.msra.mxu0 0
    %478 = vmatpush.bf16.msra.mxu0 0
    %479 = vmatpush.bf16.msra.mxu0 %v470
    %480 = vmatmul.bf16.gmra.mxu0 %v467
    %v481 = vpop.f32.mrf.mxu0
    %v482 = vadd.f32 0.0, %v481
    %v483 = vpop.f32.mrf.mxu0
    %484 = vdwg.mxu0
    %485 = vrot.lane.b32.xlu0 %v302, 56
    %v486 = vpop.permute.xlu0 %485
    %v488 = vsel %vm280, %v463, 0
    %v491 = vsel %vm353, %v486, 0
    %493 = vmatpush.bf16.msra.mxu0 0
    %494 = vmatpush.bf16.msra.mxu0 0
    %495 = vmatpush.bf16.msra.mxu0 0
    %496 = vmatpush.bf16.msra.mxu0 0
    %497 = vmatpush.bf16.msra.mxu0 0
    %498 = vmatpush.bf16.msra.mxu0 0
    %499 = vmatpush.bf16.msra.mxu0 0
    %500 = vmatpush.bf16.msra.mxu0 %v491
    %501 = vmatmul.bf16.gmra.mxu0 %v488
    %v502 = vpop.f32.mrf.mxu0
    %v503 = vadd.f32 0.0, %v502
    %v504 = vpop.f32.mrf.mxu0
    %505 = vdwg.mxu0
    %s506 = scalar_lea.vmem [#allocation2], 32
    %v507 = vld [vmem:[%s506] sm:$0xff]
    %v508 = vld [vmem:[%s506 + $0x8] sm:$0xff]
    %509 = vrot.lane.b32.xlu0 %v277, 112
    %v510 = vpop.permute.xlu0 %509
    %511 = vrot.lane.b32.xlu0 %v277, 80
    %v512 = vpop.permute.xlu0 %511
    %v514 = vsel %vm280, %v510, 0
    %v517 = vsel %vm280, %v512, 0
    %519 = vmatpush.bf16.xpose.msra.mxu0 0
    %520 = vmatpush.bf16.xpose.msra.mxu0 0
    %521 = vmatpush.bf16.xpose.msra.mxu0 0
    %522 = vmatpush.bf16.xpose.msra.mxu0 0
    %523 = vmatpush.bf16.xpose.msra.mxu0 0
    %524 = vmatpush.bf16.xpose.msra.mxu0 0
    %525 = vmatpush.bf16.xpose.msra.mxu0 0
    %526 = vmatpush.bf16.xpose.msra.mxu0 %v517
    %527 = vmatmul.bf16.gmra.mxu0 %v514
    %v528 = vpop.f32.mrf.mxu0
    %v529 = vadd.f32 %v507, %v528
    %v530 = vpop.f32.mrf.mxu0
    %531 = vdwg.mxu0
    %532 = vrot.lane.b32.xlu0 %v302, 112
    %v533 = vpop.permute.xlu0 %532
    %534 = vrot.lane.b32.xlu0 %v302, 80
    %v535 = vpop.permute.xlu0 %534
    %v537 = vsel %vm280, %v533, 0
    %v540 = vsel %vm280, %v535, 0
    %542 = vmatpush.bf16.xpose.msra.mxu0 0
    %543 = vmatpush.bf16.xpose.msra.mxu0 0
    %544 = vmatpush.bf16.xpose.msra.mxu0 0
    %545 = vmatpush.bf16.xpose.msra.mxu0 0
    %546 = vmatpush.bf16.xpose.msra.mxu0 0
    %547 = vmatpush.bf16.xpose.msra.mxu0 0
    %548 = vmatpush.bf16.xpose.msra.mxu0 0
    %549 = vmatpush.bf16.xpose.msra.mxu0 %v540
    %550 = vmatmul.bf16.gmra.mxu0 %v537
    %v551 = vpop.f32.mrf.mxu0
    %v552 = vadd.f32 %v508, %v551
    %v553 = vpop.f32.mrf.mxu0
    %554 = vdwg.mxu0
    %v555 = vsel %vm280, %v529, -inf
    %556 = vmax.xlane.f32.xlu0 %v555
    %v557 = vpop.xlane.xlu0 %556
    %v558 = vsel %vm280, %v552, -inf
    %559 = vmax.xlane.f32.xlu0 %v558
    %v560 = vpop.xlane.xlu0 %559
    %v561 = vsub.f32 %v529, %v557
    %v562 = vsub.f32 %v552, %v560
    %v563 = vmul.f32 %v561, 1.442695
    %v564 = vpow.pop %v563
    %v565 = vmul.f32 %v562, 1.442695
    %v566 = vpow.pop %v565
    %v567 = vsel %vm280, %v564, 0.0
    %568 = vadd.xlane.f32.xlu0 %v567
    %v569 = vpop.xlane.xlu0 %568
    %v570 = vsel %vm280, %v566, 0.0
    %571 = vadd.xlane.f32.xlu0 %v570
    %v572 = vpop.xlane.xlu0 %571
    %v573 = vrcp.pop %v569
    %v574 = vrcp.pop %v572
    %v575 = vmul.f32 %v564, %v573
    %v576 = vmul.f32 %v566, %v574
    %v577 = vpack.c.bf16 %v575, %v575
    %v578 = vpack.c.bf16 %v576, %v576
    %579 = vrot.lane.b32.xlu0 %v277, 48
    %v580 = vpop.permute.xlu0 %579
    %v582 = vsel %vm280, %v577, 0
    %v585 = vsel %vm353, %v580, 0
    %587 = vmatpush.bf16.msra.mxu0 0
    %588 = vmatpush.bf16.msra.mxu0 0
    %589 = vmatpush.bf16.msra.mxu0 0
    %590 = vmatpush.bf16.msra.mxu0 0
    %591 = vmatpush.bf16.msra.mxu0 0
    %592 = vmatpush.bf16.msra.mxu0 0
    %593 = vmatpush.bf16.msra.mxu0 0
    %594 = vmatpush.bf16.msra.mxu0 %v585
    %595 = vmatmul.bf16.gmra.mxu0 %v582
    %v596 = vpop.f32.mrf.mxu0
    %v597 = vadd.f32 0.0, %v596
    %v598 = vpop.f32.mrf.mxu0
    %599 = vdwg.mxu0
    %600 = vrot.lane.b32.xlu0 %v302, 48
    %v601 = vpop.permute.xlu0 %600
    %v603 = vsel %vm280, %v578, 0
    %v606 = vsel %vm353, %v601, 0
    %608 = vmatpush.bf16.msra.mxu0 0
    %609 = vmatpush.bf16.msra.mxu0 0
    %610 = vmatpush.bf16.msra.mxu0 0
    %611 = vmatpush.bf16.msra.mxu0 0
    %612 = vmatpush.bf16.msra.mxu0 0
    %613 = vmatpush.bf16.msra.mxu0 0
    %614 = vmatpush.bf16.msra.mxu0 0
    %615 = vmatpush.bf16.msra.mxu0 %v606
    %616 = vmatmul.bf16.gmra.mxu0 %v603
    %v617 = vpop.f32.mrf.mxu0
    %v618 = vadd.f32 0.0, %v617
    %v619 = vpop.f32.mrf.mxu0
    %620 = vdwg.mxu0
    %s621 = scalar_lea.vmem [#allocation2], 48
    %v622 = vld [vmem:[%s621] sm:$0xff]
    %v623 = vld [vmem:[%s621 + $0x8] sm:$0xff]
    %624 = vrot.lane.b32.xlu0 %v277, 104
    %v625 = vpop.permute.xlu0 %624
    %626 = vrot.lane.b32.xlu0 %v277, 72
    %v627 = vpop.permute.xlu0 %626
    %v629 = vsel %vm280, %v625, 0
    %v632 = vsel %vm280, %v627, 0
    %634 = vmatpush.bf16.xpose.msra.mxu0 0
    %635 = vmatpush.bf16.xpose.msra.mxu0 0
    %636 = vmatpush.bf16.xpose.msra.mxu0 0
    %637 = vmatpush.bf16.xpose.msra.mxu0 0
    %638 = vmatpush.bf16.xpose.msra.mxu0 0
    %639 = vmatpush.bf16.xpose.msra.mxu0 0
    %640 = vmatpush.bf16.xpose.msra.mxu0 0
    %641 = vmatpush.bf16.xpose.msra.mxu0 %v632
    %642 = vmatmul.bf16.gmra.mxu0 %v629
    %v643 = vpop.f32.mrf.mxu0
    %v644 = vadd.f32 %v622, %v643
    %v645 = vpop.f32.mrf.mxu0
    %646 = vdwg.mxu0
    %647 = vrot.lane.b32.xlu0 %v302, 104
    %v648 = vpop.permute.xlu0 %647
    %649 = vrot.lane.b32.xlu0 %v302, 72
    %v650 = vpop.permute.xlu0 %649
    %v652 = vsel %vm280, %v648, 0
    %v655 = vsel %vm280, %v650, 0
    %657 = vmatpush.bf16.xpose.msra.mxu0 0
    %658 = vmatpush.bf16.xpose.msra.mxu0 0
    %659 = vmatpush.bf16.xpose.msra.mxu0 0
    %660 = vmatpush.bf16.xpose.msra.mxu0 0
    %661 = vmatpush.bf16.xpose.msra.mxu0 0
    %662 = vmatpush.bf16.xpose.msra.mxu0 0
    %663 = vmatpush.bf16.xpose.msra.mxu0 0
    %664 = vmatpush.bf16.xpose.msra.mxu0 %v655
    %665 = vmatmul.bf16.gmra.mxu0 %v652
    %v666 = vpop.f32.mrf.mxu0
    %v667 = vadd.f32 %v623, %v666
    %v668 = vpop.f32.mrf.mxu0
    %669 = vdwg.mxu0
    %v670 = vsel %vm280, %v644, -inf
    %671 = vmax.xlane.f32.xlu0 %v670
    %v672 = vpop.xlane.xlu0 %671
    %v673 = vsel %vm280, %v667, -inf
    %674 = vmax.xlane.f32.xlu0 %v673
    %v675 = vpop.xlane.xlu0 %674
    %v676 = vsub.f32 %v644, %v672
    %v677 = vsub.f32 %v667, %v675
    %v678 = vmul.f32 %v676, 1.442695
    %v679 = vpow.pop %v678
    %v680 = vmul.f32 %v677, 1.442695
    %v681 = vpow.pop %v680
    %v682 = vsel %vm280, %v679, 0.0
    %683 = vadd.xlane.f32.xlu0 %v682
    %v684 = vpop.xlane.xlu0 %683
    %v685 = vsel %vm280, %v681, 0.0
    %686 = vadd.xlane.f32.xlu0 %v685
    %v687 = vpop.xlane.xlu0 %686
    %v688 = vrcp.pop %v684
    %v689 = vrcp.pop %v687
    %v690 = vmul.f32 %v679, %v688
    %v691 = vmul.f32 %v681, %v689
    %v692 = vpack.c.bf16 %v690, %v690
    %v693 = vpack.c.bf16 %v691, %v691
    %694 = vrot.lane.b32.xlu0 %v277, 40
    %v695 = vpop.permute.xlu0 %694
    %v697 = vsel %vm280, %v692, 0
    %v700 = vsel %vm353, %v695, 0
    %702 = vmatpush.bf16.msra.mxu0 0
    %703 = vmatpush.bf16.msra.mxu0 0
    %704 = vmatpush.bf16.msra.mxu0 0
    %705 = vmatpush.bf16.msra.mxu0 0
    %706 = vmatpush.bf16.msra.mxu0 0
    %707 = vmatpush.bf16.msra.mxu0 0
    %708 = vmatpush.bf16.msra.mxu0 0
    %709 = vmatpush.bf16.msra.mxu0 %v700
    %710 = vmatmul.bf16.gmra.mxu0 %v697
    %v711 = vpop.f32.mrf.mxu0
    %v712 = vadd.f32 0.0, %v711
    %v713 = vpop.f32.mrf.mxu0
    %714 = vdwg.mxu0
    %715 = vrot.lane.b32.xlu0 %v302, 40
    %v716 = vpop.permute.xlu0 %715
    %v718 = vsel %vm280, %v693, 0
    %v721 = vsel %vm353, %v716, 0
    %723 = vmatpush.bf16.msra.mxu0 0
    %724 = vmatpush.bf16.msra.mxu0 0
    %725 = vmatpush.bf16.msra.mxu0 0
    %726 = vmatpush.bf16.msra.mxu0 0
    %727 = vmatpush.bf16.msra.mxu0 0
    %728 = vmatpush.bf16.msra.mxu0 0
    %729 = vmatpush.bf16.msra.mxu0 0
    %730 = vmatpush.bf16.msra.mxu0 %v721
    %731 = vmatmul.bf16.gmra.mxu0 %v718
    %v732 = vpop.f32.mrf.mxu0
    %v733 = vadd.f32 0.0, %v732
    %v734 = vpop.f32.mrf.mxu0
    %735 = vdwg.mxu0
    %738 = vrot.lane.b32.xlu0 %v482, 8
    %v739 = vpop.permute.xlu0 %738
    %740 = vrot.lane.b32.xlu0 %v503, 8
    %v741 = vpop.permute.xlu0 %740
    %746 = vrot.lane.b32.xlu0 %v597, 16
    %v747 = vpop.permute.xlu0 %746
    %748 = vrot.lane.b32.xlu0 %v618, 16
    %v749 = vpop.permute.xlu0 %748
    %754 = vrot.lane.b32.xlu0 %v712, 24
    %v755 = vpop.permute.xlu0 %754
    %756 = vrot.lane.b32.xlu0 %v733, 24
    %v757 = vpop.permute.xlu0 %756
    %v760 = vsel %vm280, %v367, %v739
    %v761 = vsel %vm280, %v388, %v741
    %vm762 = vcmask 130048
    %v763 = vsel %vm762, %v760, %v747
    %v764 = vsel %vm762, %v761, %v749
    %vm765 = vcmask 195584
    %v766 = vsel %vm765, %v763, %v755
    %v767 = vsel %vm765, %v764, %v757
    %v768 = vpack.c.bf16 %v767, %v766
    %v773 = vunpack.c.l.b16 %v267
    %v774 = vunpack.c.l.b16 %v268
    %v775 = vunpack.c.l.b16 %v269
    %v776 = vunpack.c.l.b16 %v270
    %v777 = vpack.c.b16 %v774, %v773
    %v778 = vpack.c.b16 %v776, %v775
    %v782 = vsel %vm171, %v768, 0
    %784 = vmatpush.bf16.msra.mxu0 0
    %785 = vmatpush.bf16.msra.mxu0 0
    %786 = vmatpush.bf16.msra.mxu0 0
    %787 = vmatpush.bf16.msra.mxu0 0
    %788 = vmatpush.bf16.msra.mxu0 0
    %789 = vmatpush.bf16.msra.mxu0 0
    %790 = vmatpush.bf16.msra.mxu0 %v778
    %791 = vmatpush.bf16.msra.mxu0 %v777
    %792 = vmatmul.bf16.gmra.mxu0 %v782
    %v793 = vpop.f32.mrf.mxu0
    %v794 = vadd.f32 0.0, %v793
    %v795 = vpop.f32.mrf.mxu0
    %v796 = vadd.f32 0.0, %v795
    %797 = vdwg.mxu0
    %v798 = vadd.f32 %v167, %v794
    %v799 = vadd.f32 %v168, %v796
    %v800 = vld [vmem:[%s8] sm:$0x1]
    %v801 = vld [vmem:[%s9] sm:$0x1]
    %v802 = vsel %vm171, %v798, 0.0
    %803 = vadd.xlane.f32.xlu0 %v802
    %v804 = vpop.xlane.xlu0 %803
    %v805 = vsel %vm171, %v799, 0.0
    %806 = vadd.xlane.f32.xlu0 %v805
    %v807 = vpop.xlane.xlu0 %806
    %v808 = vmul.f32 %v804, %v184
    %v809 = vmul.f32 %v807, %v184
    %v810 = vsub.f32 %v798, %v808
    %v811 = vsub.f32 %v799, %v809
    %v812 = vmul.f32 %v810, %v810
    %v813 = vmul.f32 %v811, %v811
    %v814 = vsel %vm171, %v812, 0.0
    %815 = vadd.xlane.f32.xlu0 %v814
    %v816 = vpop.xlane.xlu0 %815
    %v817 = vsel %vm171, %v813, 0.0
    %818 = vadd.xlane.f32.xlu0 %v817
    %v819 = vpop.xlane.xlu0 %818
    %v820 = vmul.f32 %v816, %v184
    %v821 = vmul.f32 %v819, %v184
    %v822 = vadd.f32 %v820, 1e-06
    %v823 = vadd.f32 %v821, 1e-06
    %v824 = vrsqrt.pop %v822
    %v825 = vmul.f32 %v824, %v822
    %v826 = vmul.f32 %v825, %v824
    %v827 = vmul.f32 0.5, %v826
    %v828 = vsub.f32 1.5, %v827
    %v829 = vmul.f32 %v824, %v828
    %vm830 = vweird.f32 %v822
    %vm831 = vweird.f32 %v824
    %vm832 = vmor %vm830, %vm831
    %v833 = vsel %vm832, %v824, %v829
    %v834 = vrsqrt.pop %v823
    %v835 = vmul.f32 %v834, %v823
    %v836 = vmul.f32 %v835, %v834
    %v837 = vmul.f32 0.5, %v836
    %v838 = vsub.f32 1.5, %v837
    %v839 = vmul.f32 %v834, %v838
    %vm840 = vweird.f32 %v823
    %vm841 = vweird.f32 %v834
    %vm842 = vmor %vm840, %vm841
    %v843 = vsel %vm842, %v834, %v839
    %v844 = vmul.f32 %v810, %v833
    %v845 = vmul.f32 %v811, %v843
    %v847 = vperm.slane %v800, 0
    %v849 = vmul.f32 %v844, %v847
    %v850 = vmul.f32 %v845, %v847
    %v852 = vperm.slane %v801, 0
    %v854 = vadd.f32 %v849, %v852
    %v855 = vadd.f32 %v850, %v852
    %v856 = vpack.c.bf16 %v855, %v854
    %v857 = vld [vmem:[#allocation8] sm:$0xf]
    %v858 = vld [vmem:[#allocation8 + $0x4] sm:$0xf]
    %v859 = vld [vmem:[#allocation8 + $0x8] sm:$0xf]
    %v860 = vld [vmem:[#allocation8 + $0xc] sm:$0xf]
    %v865 = vunpack.c.l.b16 %v857
    %v866 = vunpack.c.l.b16 %v858
    %v867 = vunpack.c.l.b16 %v859
    %v868 = vunpack.c.l.b16 %v860
    %v869 = vpack.c.b16 %v866, %v865
    %v870 = vpack.c.b16 %v868, %v867
    %v874 = vsel %vm171, %v856, 0
    %876 = vmatpush.bf16.msra.mxu0 0
    %877 = vmatpush.bf16.msra.mxu0 0
    %878 = vmatpush.bf16.msra.mxu0 0
    %879 = vmatpush.bf16.msra.mxu0 0
    %880 = vmatpush.bf16.msra.mxu0 0
    %881 = vmatpush.bf16.msra.mxu0 0
    %882 = vmatpush.bf16.msra.mxu0 %v870
    %883 = vmatpush.bf16.msra.mxu0 %v869
    %884 = vmatmul.bf16.gmra.mxu0 %v874
    %v885 = vpop.f32.mrf.mxu0
    %v886 = vadd.f32 0.0, %v885
    %v887 = vpop.f32.mrf.mxu0
    %v888 = vadd.f32 0.0, %v887
    %889 = vdwg.mxu0
    %v890 = vld [vmem:[%s1] sm:$0xff]
    %v891 = vld [vmem:[%s1 + $0x8] sm:$0xff]
    %v892 = vpack.c.bf16 %v891, %v890
    %v893 = vld [vmem:[#allocation10] sm:$0xf]
    %v894 = vld [vmem:[#allocation10 + $0x4] sm:$0xf]
    %v895 = vld [vmem:[#allocation10 + $0x8] sm:$0xf]
    %v896 = vld [vmem:[#allocation10 + $0xc] sm:$0xf]
    %v901 = vunpack.c.l.b16 %v893
    %v902 = vunpack.c.l.b16 %v894
    %v903 = vunpack.c.l.b16 %v895
    %v904 = vunpack.c.l.b16 %v896
    %v905 = vpack.c.b16 %v902, %v901
    %v906 = vpack.c.b16 %v904, %v903
    %v910 = vsel %vm171, %v892, 0
    %912 = vmatpush.bf16.msra.mxu0 0
    %913 = vmatpush.bf16.msra.mxu0 0
    %914 = vmatpush.bf16.msra.mxu0 0
    %915 = vmatpush.bf16.msra.mxu0 0
    %916 = vmatpush.bf16.msra.mxu0 0
    %917 = vmatpush.bf16.msra.mxu0 0
    %918 = vmatpush.bf16.msra.mxu0 %v906
    %919 = vmatpush.bf16.msra.mxu0 %v905
    %920 = vmatmul.bf16.gmra.mxu0 %v910
    %v921 = vpop.f32.mrf.mxu0
    %v922 = vadd.f32 0.0, %v921
    %v923 = vpop.f32.mrf.mxu0
    %v924 = vadd.f32 0.0, %v923
    %925 = vdwg.mxu0
    %v926 = vld [vmem:[#allocation11] sm:$0xf]
    %v927 = vld [vmem:[#allocation11 + $0x4] sm:$0xf]
    %v928 = vld [vmem:[#allocation11 + $0x8] sm:$0xf]
    %v929 = vld [vmem:[#allocation11 + $0xc] sm:$0xf]
    %v930 = vpack.c.bf16 %v886, %v886
    %v931 = vpack.c.bf16 %v888, %v888
    %v932 = vpack.c.bf16 %v922, %v922
    %v933 = vpack.c.bf16 %v924, %v924
    %v934 = vld [vmem:[#allocation5] sm:$0xff]
    %v935 = vld [vmem:[#allocation5 + $0x8] sm:$0xff]
    %v937 = vsel %vm280, %v930, 0
    %v940 = vsel %vm280, %v932, 0
    %942 = vmatpush.bf16.xpose.msra.mxu0 0
    %943 = vmatpush.bf16.xpose.msra.mxu0 0
    %944 = vmatpush.bf16.xpose.msra.mxu0 0
    %945 = vmatpush.bf16.xpose.msra.mxu0 0
    %946 = vmatpush.bf16.xpose.msra.mxu0 0
    %947 = vmatpush.bf16.xpose.msra.mxu0 0
    %948 = vmatpush.bf16.xpose.msra.mxu0 0
    %949 = vmatpush.bf16.xpose.msra.mxu0 %v940
    %950 = vmatmul.bf16.gmra.mxu0 %v937
    %v951 = vpop.f32.mrf.mxu0
    %v952 = vadd.f32 %v934, %v951
    %v953 = vpop.f32.mrf.mxu0
    %954 = vdwg.mxu0
    %v956 = vsel %vm280, %v931, 0
    %v959 = vsel %vm280, %v933, 0
    %961 = vmatpush.bf16.xpose.msra.mxu0 0
    %962 = vmatpush.bf16.xpose.msra.mxu0 0
    %963 = vmatpush.bf16.xpose.msra.mxu0 0
    %964 = vmatpush.bf16.xpose.msra.mxu0 0
    %965 = vmatpush.bf16.xpose.msra.mxu0 0
    %966 = vmatpush.bf16.xpose.msra.mxu0 0
    %967 = vmatpush.bf16.xpose.msra.mxu0 0
    %968 = vmatpush.bf16.xpose.msra.mxu0 %v959
    %969 = vmatmul.bf16.gmra.mxu0 %v956
    %v970 = vpop.f32.mrf.mxu0
    %v971 = vadd.f32 %v935, %v970
    %v972 = vpop.f32.mrf.mxu0
    %973 = vdwg.mxu0
    %v974 = vsel %vm280, %v952, -inf
    %975 = vmax.xlane.f32.xlu0 %v974
    %v976 = vpop.xlane.xlu0 %975
    %v977 = vsel %vm280, %v971, -inf
    %978 = vmax.xlane.f32.xlu0 %v977
    %v979 = vpop.xlane.xlu0 %978
    %v980 = vsub.f32 %v952, %v976
    %v981 = vsub.f32 %v971, %v979
    %v982 = vmul.f32 %v980, 1.442695
    %v983 = vpow.pop %v982
    %v984 = vmul.f32 %v981, 1.442695
    %v985 = vpow.pop %v984
    %v986 = vsel %vm280, %v983, 0.0
    %987 = vadd.xlane.f32.xlu0 %v986
    %v988 = vpop.xlane.xlu0 %987
    %v989 = vsel %vm280, %v985, 0.0
    %990 = vadd.xlane.f32.xlu0 %v989
    %v991 = vpop.xlane.xlu0 %990
    %v992 = vrcp.pop %v988
    %v993 = vrcp.pop %v991
    %v994 = vmul.f32 %v983, %v992
    %v995 = vmul.f32 %v985, %v993
    %v996 = vpack.c.bf16 %v994, %v994
    %v997 = vpack.c.bf16 %v995, %v995
    %v999 = vunpack.c.l.b16 %v932
    %v1000 = vpack.c.b16 %v999, %v999
    %1001 = vrot.lane.b32.xlu0 %v1000, 96
    %v1002 = vpop.permute.xlu0 %1001
    %v1004 = vsel %vm280, %v996, 0
    %v1007 = vsel %vm353, %v1002, 0
    %1009 = vmatpush.bf16.msra.mxu0 0
    %1010 = vmatpush.bf16.msra.mxu0 0
    %1011 = vmatpush.bf16.msra.mxu0 0
    %1012 = vmatpush.bf16.msra.mxu0 0
    %1013 = vmatpush.bf16.msra.mxu0 0
    %1014 = vmatpush.bf16.msra.mxu0 0
    %1015 = vmatpush.bf16.msra.mxu0 0
    %1016 = vmatpush.bf16.msra.mxu0 %v1007
    %1017 = vmatmul.bf16.gmra.mxu0 %v1004
    %v1018 = vpop.f32.mrf.mxu0
    %v1019 = vadd.f32 0.0, %v1018
    %v1020 = vpop.f32.mrf.mxu0
    %1021 = vdwg.mxu0
    %v1023 = vunpack.c.l.b16 %v933
    %v1024 = vpack.c.b16 %v1023, %v1023
    %1025 = vrot.lane.b32.xlu0 %v1024, 96
    %v1026 = vpop.permute.xlu0 %1025
    %v1028 = vsel %vm280, %v997, 0
    %v1031 = vsel %vm353, %v1026, 0
    %1033 = vmatpush.bf16.msra.mxu0 0
    %1034 = vmatpush.bf16.msra.mxu0 0
    %1035 = vmatpush.bf16.msra.mxu0 0
    %1036 = vmatpush.bf16.msra.mxu0 0
    %1037 = vmatpush.bf16.msra.mxu0 0
    %1038 = vmatpush.bf16.msra.mxu0 0
    %1039 = vmatpush.bf16.msra.mxu0 0
    %1040 = vmatpush.bf16.msra.mxu0 %v1031
    %1041 = vmatmul.bf16.gmra.mxu0 %v1028
    %v1042 = vpop.f32.mrf.mxu0
    %v1043 = vadd.f32 0.0, %v1042
    %v1044 = vpop.f32.mrf.mxu0
    %1045 = vdwg.mxu0
    %s1046 = scalar_lea.vmem [#allocation5], 16
    %v1047 = vld [vmem:[%s1046] sm:$0xff]
    %v1048 = vld [vmem:[%s1046 + $0x8] sm:$0xff]
    %v1050 = vunpack.c.l.b16 %v930
    %v1051 = vpack.c.b16 %v1050, %v1050
    %1052 = vrot.lane.b32.xlu0 %v1051, 120
    %v1053 = vpop.permute.xlu0 %1052
    %1054 = vrot.lane.b32.xlu0 %v1000, 120
    %v1055 = vpop.permute.xlu0 %1054
    %v1057 = vsel %vm280, %v1053, 0
    %v1060 = vsel %vm280, %v1055, 0
    %1062 = vmatpush.bf16.xpose.msra.mxu0 0
    %1063 = vmatpush.bf16.xpose.msra.mxu0 0
    %1064 = vmatpush.bf16.xpose.msra.mxu0 0
    %1065 = vmatpush.bf16.xpose.msra.mxu0 0
    %1066 = vmatpush.bf16.xpose.msra.mxu0 0
    %1067 = vmatpush.bf16.xpose.msra.mxu0 0
    %1068 = vmatpush.bf16.xpose.msra.mxu0 0
    %1069 = vmatpush.bf16.xpose.msra.mxu0 %v1060
    %1070 = vmatmul.bf16.gmra.mxu0 %v1057
    %v1071 = vpop.f32.mrf.mxu0
    %v1072 = vadd.f32 %v1047, %v1071
    %v1073 = vpop.f32.mrf.mxu0
    %1074 = vdwg.mxu0
    %v1076 = vunpack.c.l.b16 %v931
    %v1077 = vpack.c.b16 %v1076, %v1076
    %1078 = vrot.lane.b32.xlu0 %v1077, 120
    %v1079 = vpop.permute.xlu0 %1078
    %1080 = vrot.lane.b32.xlu0 %v1024, 120
    %v1081 = vpop.permute.xlu0 %1080
    %v1083 = vsel %vm280, %v1079, 0
    %v1086 = vsel %vm280, %v1081, 0
    %1088 = vmatpush.bf16.xpose.msra.mxu0 0
    %1089 = vmatpush.bf16.xpose.msra.mxu0 0
    %1090 = vmatpush.bf16.xpose.msra.mxu0 0
    %1091 = vmatpush.bf16.xpose.msra.mxu0 0
    %1092 = vmatpush.bf16.xpose.msra.mxu0 0
    %1093 = vmatpush.bf16.xpose.msra.mxu0 0
    %1094 = vmatpush.bf16.xpose.msra.mxu0 0
    %1095 = vmatpush.bf16.xpose.msra.mxu0 %v1086
    %1096 = vmatmul.bf16.gmra.mxu0 %v1083
    %v1097 = vpop.f32.mrf.mxu0
    %v1098 = vadd.f32 %v1048, %v1097
    %v1099 = vpop.f32.mrf.mxu0
    %1100 = vdwg.mxu0
    %v1101 = vsel %vm280, %v1072, -inf
    %1102 = vmax.xlane.f32.xlu0 %v1101
    %v1103 = vpop.xlane.xlu0 %1102
    %v1104 = vsel %vm280, %v1098, -inf
    %1105 = vmax.xlane.f32.xlu0 %v1104
    %v1106 = vpop.xlane.xlu0 %1105
    %v1107 = vsub.f32 %v1072, %v1103
    %v1108 = vsub.f32 %v1098, %v1106
    %v1109 = vmul.f32 %v1107, 1.442695
    %v1110 = vpow.pop %v1109
    %v1111 = vmul.f32 %v1108, 1.442695
    %v1112 = vpow.pop %v1111
    %v1113 = vsel %vm280, %v1110, 0.0
    %1114 = vadd.xlane.f32.xlu0 %v1113
    %v1115 = vpop.xlane.xlu0 %1114
    %v1116 = vsel %vm280, %v1112, 0.0
    %1117 = vadd.xlane.f32.xlu0 %v1116
    %v1118 = vpop.xlane.xlu0 %1117
    %v1119 = vrcp.pop %v1115
    %v1120 = vrcp.pop %v1118
    %v1121 = vmul.f32 %v1110, %v1119
    %v1122 = vmul.f32 %v1112, %v1120
    %v1123 = vpack.c.bf16 %v1121, %v1121
    %v1124 = vpack.c.bf16 %v1122, %v1122
    %1125 = vrot.lane.b32.xlu0 %v1000, 88
    %v1126 = vpop.permute.xlu0 %1125
    %v1128 = vsel %vm280, %v1123, 0
    %v1131 = vsel %vm353, %v1126, 0
    %1133 = vmatpush.bf16.msra.mxu0 0
    %1134 = vmatpush.bf16.msra.mxu0 0
    %1135 = vmatpush.bf16.msra.mxu0 0
    %1136 = vmatpush.bf16.msra.mxu0 0
    %1137 = vmatpush.bf16.msra.mxu0 0
    %1138 = vmatpush.bf16.msra.mxu0 0
    %1139 = vmatpush.bf16.msra.mxu0 0
    %1140 = vmatpush.bf16.msra.mxu0 %v1131
    %1141 = vmatmul.bf16.gmra.mxu0 %v1128
    %v1142 = vpop.f32.mrf.mxu0
    %v1143 = vadd.f32 0.0, %v1142
    %v1144 = vpop.f32.mrf.mxu0
    %1145 = vdwg.mxu0
    %1146 = vrot.lane.b32.xlu0 %v1024, 88
    %v1147 = vpop.permute.xlu0 %1146
    %v1149 = vsel %vm280, %v1124, 0
    %v1152 = vsel %vm353, %v1147, 0
    %1154 = vmatpush.bf16.msra.mxu0 0
    %1155 = vmatpush.bf16.msra.mxu0 0
    %1156 = vmatpush.bf16.msra.mxu0 0
    %1157 = vmatpush.bf16.msra.mxu0 0
    %1158 = vmatpush.bf16.msra.mxu0 0
    %1159 = vmatpush.bf16.msra.mxu0 0
    %1160 = vmatpush.bf16.msra.mxu0 0
    %1161 = vmatpush.bf16.msra.mxu0 %v1152
    %1162 = vmatmul.bf16.gmra.mxu0 %v1149
    %v1163 = vpop.f32.mrf.mxu0
    %v1164 = vadd.f32 0.0, %v1163
    %v1165 = vpop.f32.mrf.mxu0
    %1166 = vdwg.mxu0
    %s1167 = scalar_lea.vmem [#allocation5], 32
    %v1168 = vld [vmem:[%s1167] sm:$0xff]
    %v1169 = vld [vmem:[%s1167 + $0x8] sm:$0xff]
    %1170 = vrot.lane.b32.xlu0 %v1051, 112
    %v1171 = vpop.permute.xlu0 %1170
    %1172 = vrot.lane.b32.xlu0 %v1000, 112
    %v1173 = vpop.permute.xlu0 %1172
    %v1175 = vsel %vm280, %v1171, 0
    %v1178 = vsel %vm280, %v1173, 0
    %1180 = vmatpush.bf16.xpose.msra.mxu0 0
    %1181 = vmatpush.bf16.xpose.msra.mxu0 0
    %1182 = vmatpush.bf16.xpose.msra.mxu0 0
    %1183 = vmatpush.bf16.xpose.msra.mxu0 0
    %1184 = vmatpush.bf16.xpose.msra.mxu0 0
    %1185 = vmatpush.bf16.xpose.msra.mxu0 0
    %1186 = vmatpush.bf16.xpose.msra.mxu0 0
    %1187 = vmatpush.bf16.xpose.msra.mxu0 %v1178
    %1188 = vmatmul.bf16.gmra.mxu0 %v1175
    %v1189 = vpop.f32.mrf.mxu0
    %v1190 = vadd.f32 %v1168, %v1189
    %v1191 = vpop.f32.mrf.mxu0
    %1192 = vdwg.mxu0
    %1193 = vrot.lane.b32.xlu0 %v1077, 112
    %v1194 = vpop.permute.xlu0 %1193
    %1195 = vrot.lane.b32.xlu0 %v1024, 112
    %v1196 = vpop.permute.xlu0 %1195
    %v1198 = vsel %vm280, %v1194, 0
    %v1201 = vsel %vm280, %v1196, 0
    %1203 = vmatpush.bf16.xpose.msra.mxu0 0
    %1204 = vmatpush.bf16.xpose.msra.mxu0 0
    %1205 = vmatpush.bf16.xpose.msra.mxu0 0
    %1206 = vmatpush.bf16.xpose.msra.mxu0 0
    %1207 = vmatpush.bf16.xpose.msra.mxu0 0
    %1208 = vmatpush.bf16.xpose.msra.mxu0 0
    %1209 = vmatpush.bf16.xpose.msra.mxu0 0
    %1210 = vmatpush.bf16.xpose.msra.mxu0 %v1201
    %1211 = vmatmul.bf16.gmra.mxu0 %v1198
    %v1212 = vpop.f32.mrf.mxu0
    %v1213 = vadd.f32 %v1169, %v1212
    %v1214 = vpop.f32.mrf.mxu0
    %1215 = vdwg.mxu0
    %v1216 = vsel %vm280, %v1190, -inf
    %1217 = vmax.xlane.f32.xlu0 %v1216
    %v1218 = vpop.xlane.xlu0 %1217
    %v1219 = vsel %vm280, %v1213, -inf
    %1220 = vmax.xlane.f32.xlu0 %v1219
    %v1221 = vpop.xlane.xlu0 %1220
    %v1222 = vsub.f32 %v1190, %v1218
    %v1223 = vsub.f32 %v1213, %v1221
    %v1224 = vmul.f32 %v1222, 1.442695
    %v1225 = vpow.pop %v1224
    %v1226 = vmul.f32 %v1223, 1.442695
    %v1227 = vpow.pop %v1226
    %v1228 = vsel %vm280, %v1225, 0.0
    %1229 = vadd.xlane.f32.xlu0 %v1228
    %v1230 = vpop.xlane.xlu0 %1229
    %v1231 = vsel %vm280, %v1227, 0.0
    %1232 = vadd.xlane.f32.xlu0 %v1231
    %v1233 = vpop.xlane.xlu0 %1232
    %v1234 = vrcp.pop %v1230
    %v1235 = vrcp.pop %v1233
    %v1236 = vmul.f32 %v1225, %v1234
    %v1237 = vmul.f32 %v1227, %v1235
    %v1238 = vpack.c.bf16 %v1236, %v1236
    %v1239 = vpack.c.bf16 %v1237, %v1237
    %1240 = vrot.lane.b32.xlu0 %v1000, 80
    %v1241 = vpop.permute.xlu0 %1240
    %v1243 = vsel %vm280, %v1238, 0
    %v1246 = vsel %vm353, %v1241, 0
    %1248 = vmatpush.bf16.msra.mxu0 0
    %1249 = vmatpush.bf16.msra.mxu0 0
    %1250 = vmatpush.bf16.msra.mxu0 0
    %1251 = vmatpush.bf16.msra.mxu0 0
    %1252 = vmatpush.bf16.msra.mxu0 0
    %1253 = vmatpush.bf16.msra.mxu0 0
    %1254 = vmatpush.bf16.msra.mxu0 0
    %1255 = vmatpush.bf16.msra.mxu0 %v1246
    %1256 = vmatmul.bf16.gmra.mxu0 %v1243
    %v1257 = vpop.f32.mrf.mxu0
    %v1258 = vadd.f32 0.0, %v1257
    %v1259 = vpop.f32.mrf.mxu0
    %1260 = vdwg.mxu0
    %1261 = vrot.lane.b32.xlu0 %v1024, 80
    %v1262 = vpop.permute.xlu0 %1261
    %v1264 = vsel %vm280, %v1239, 0
    %v1267 = vsel %vm353, %v1262, 0
    %1269 = vmatpush.bf16.msra.mxu0 0
    %1270 = vmatpush.bf16.msra.mxu0 0
    %1271 = vmatpush.bf16.msra.mxu0 0
    %1272 = vmatpush.bf16.msra.mxu0 0
    %1273 = vmatpush.bf16.msra.mxu0 0
    %1274 = vmatpush.bf16.msra.mxu0 0
    %1275 = vmatpush.bf16.msra.mxu0 0
    %1276 = vmatpush.bf16.msra.mxu0 %v1267
    %1277 = vmatmul.bf16.gmra.mxu0 %v1264
    %v1278 = vpop.f32.mrf.mxu0
    %v1279 = vadd.f32 0.0, %v1278
    %v1280 = vpop.f32.mrf.mxu0
    %1281 = vdwg.mxu0
    %s1282 = scalar_lea.vmem [#allocation5], 48
    %v1283 = vld [vmem:[%s1282] sm:$0xff]
    %v1284 = vld [vmem:[%s1282 + $0x8] sm:$0xff]
    %1285 = vrot.lane.b32.xlu0 %v1051, 104
    %v1286 = vpop.permute.xlu0 %1285
    %1287 = vrot.lane.b32.xlu0 %v1000, 104
    %v1288 = vpop.permute.xlu0 %1287
    %v1290 = vsel %vm280, %v1286, 0
    %v1293 = vsel %vm280, %v1288, 0
    %1295 = vmatpush.bf16.xpose.msra.mxu0 0
    %1296 = vmatpush.bf16.xpose.msra.mxu0 0
    %1297 = vmatpush.bf16.xpose.msra.mxu0 0
    %1298 = vmatpush.bf16.xpose.msra.mxu0 0
    %1299 = vmatpush.bf16.xpose.msra.mxu0 0
    %1300 = vmatpush.bf16.xpose.msra.mxu0 0
    %1301 = vmatpush.bf16.xpose.msra.mxu0 0
    %1302 = vmatpush.bf16.xpose.msra.mxu0 %v1293
    %1303 = vmatmul.bf16.gmra.mxu0 %v1290
    %v1304 = vpop.f32.mrf.mxu0
    %v1305 = vadd.f32 %v1283, %v1304
    %v1306 = vpop.f32.mrf.mxu0
    %1307 = vdwg.mxu0
    %1308 = vrot.lane.b32.xlu0 %v1077, 104
    %v1309 = vpop.permute.xlu0 %1308
    %1310 = vrot.lane.b32.xlu0 %v1024, 104
    %v1311 = vpop.permute.xlu0 %1310
    %v1313 = vsel %vm280, %v1309, 0
    %v1316 = vsel %vm280, %v1311, 0
    %1318 = vmatpush.bf16.xpose.msra.mxu0 0
    %1319 = vmatpush.bf16.xpose.msra.mxu0 0
    %1320 = vmatpush.bf16.xpose.msra.mxu0 0
    %1321 = vmatpush.bf16.xpose.msra.mxu0 0
    %1322 = vmatpush.bf16.xpose.msra.mxu0 0
    %1323 = vmatpush.bf16.xpose.msra.mxu0 0
    %1324 = vmatpush.bf16.xpose.msra.mxu0 0
    %1325 = vmatpush.bf16.xpose.msra.mxu0 %v1316
    %1326 = vmatmul.bf16.gmra.mxu0 %v1313
    %v1327 = vpop.f32.mrf.mxu0
    %v1328 = vadd.f32 %v1284, %v1327
    %v1329 = vpop.f32.mrf.mxu0
    %1330 = vdwg.mxu0
    %v1331 = vsel %vm280, %v1305, -inf
    %1332 = vmax.xlane.f32.xlu0 %v1331
    %v1333 = vpop.xlane.xlu0 %1332
    %v1334 = vsel %vm280, %v1328, -inf
    %1335 = vmax.xlane.f32.xlu0 %v1334
    %v1336 = vpop.xlane.xlu0 %1335
    %v1337 = vsub.f32 %v1305, %v1333
    %v1338 = vsub.f32 %v1328, %v1336
    %v1339 = vmul.f32 %v1337, 1.442695
    %v1340 = vpow.pop %v1339
    %v1341 = vmul.f32 %v1338, 1.442695
    %v1342 = vpow.pop %v1341
    %v1343 = vsel %vm280, %v1340, 0.0
    %1344 = vadd.xlane.f32.xlu0 %v1343
    %v1345 = vpop.xlane.xlu0 %1344
    %v1346 = vsel %vm280, %v1342, 0.0
    %1347 = vadd.xlane.f32.xlu0 %v1346
    %v1348 = vpop.xlane.xlu0 %1347
    %v1349 = vrcp.pop %v1345
    %v1350 = vrcp.pop %v1348
    %v1351 = vmul.f32 %v1340, %v1349
    %v1352 = vmul.f32 %v1342, %v1350
    %v1353 = vpack.c.bf16 %v1351, %v1351
    %v1354 = vpack.c.bf16 %v1352, %v1352
    %1355 = vrot.lane.b32.xlu0 %v1000, 72
    %v1356 = vpop.permute.xlu0 %1355
    %v1358 = vsel %vm280, %v1353, 0
    %v1361 = vsel %vm353, %v1356, 0
    %1363 = vmatpush.bf16.msra.mxu0 0
    %1364 = vmatpush.bf16.msra.mxu0 0
    %1365 = vmatpush.bf16.msra.mxu0 0
    %1366 = vmatpush.bf16.msra.mxu0 0
    %1367 = vmatpush.bf16.msra.mxu0 0
    %1368 = vmatpush.bf16.msra.mxu0 0
    %1369 = vmatpush.bf16.msra.mxu0 0
    %1370 = vmatpush.bf16.msra.mxu0 %v1361
    %1371 = vmatmul.bf16.gmra.mxu0 %v1358
    %v1372 = vpop.f32.mrf.mxu0
    %v1373 = vadd.f32 0.0, %v1372
    %v1374 = vpop.f32.mrf.mxu0
    %1375 = vdwg.mxu0
    %1376 = vrot.lane.b32.xlu0 %v1024, 72
    %v1377 = vpop.permute.xlu0 %1376
    %v1379 = vsel %vm280, %v1354, 0
    %v1382 = vsel %vm353, %v1377, 0
    %1384 = vmatpush.bf16.msra.mxu0 0
    %1385 = vmatpush.bf16.msra.mxu0 0
    %1386 = vmatpush.bf16.msra.mxu0 0
    %1387 = vmatpush.bf16.msra.mxu0 0
    %1388 = vmatpush.bf16.msra.mxu0 0
    %1389 = vmatpush.bf16.msra.mxu0 0
    %1390 = vmatpush.bf16.msra.mxu0 0
    %1391 = vmatpush.bf16.msra.mxu0 %v1382
    %1392 = vmatmul.bf16.gmra.mxu0 %v1379
    %v1393 = vpop.f32.mrf.mxu0
    %v1394 = vadd.f32 0.0, %v1393
    %v1395 = vpop.f32.mrf.mxu0
    %1396 = vdwg.mxu0
    %1399 = vrot.lane.b32.xlu0 %v1143, 8
    %v1400 = vpop.permute.xlu0 %1399
    %1401 = vrot.lane.b32.xlu0 %v1164, 8
    %v1402 = vpop.permute.xlu0 %1401
    %1407 = vrot.lane.b32.xlu0 %v1258, 16
    %v1408 = vpop.permute.xlu0 %1407
    %1409 = vrot.lane.b32.xlu0 %v1279, 16
    %v1410 = vpop.permute.xlu0 %1409
    %1415 = vrot.lane.b32.xlu0 %v1373, 24
    %v1416 = vpop.permute.xlu0 %1415
    %1417 = vrot.lane.b32.xlu0 %v1394, 24
    %v1418 = vpop.permute.xlu0 %1417
    %v1421 = vsel %vm280, %v1019, %v1400
    %v1422 = vsel %vm280, %v1043, %v1402
    %v1423 = vsel %vm762, %v1421, %v1408
    %v1424 = vsel %vm762, %v1422, %v1410
    %v1425 = vsel %vm765, %v1423, %v1416
    %v1426 = vsel %vm765, %v1424, %v1418
    %v1427 = vpack.c.bf16 %v1426, %v1425
    %v1432 = vunpack.c.l.b16 %v926
    %v1433 = vunpack.c.l.b16 %v927
    %v1434 = vunpack.c.l.b16 %v928
    %v1435 = vunpack.c.l.b16 %v929
    %v1436 = vpack.c.b16 %v1433, %v1432
    %v1437 = vpack.c.b16 %v1435, %v1434
    %v1441 = vsel %vm171, %v1427, 0
    %1443 = vmatpush.bf16.msra.mxu0 0
    %1444 = vmatpush.bf16.msra.mxu0 0
    %1445 = vmatpush.bf16.msra.mxu0 0
    %1446 = vmatpush.bf16.msra.mxu0 0
    %1447 = vmatpush.bf16.msra.mxu0 0
    %1448 = vmatpush.bf16.msra.mxu0 0
    %1449 = vmatpush.bf16.msra.mxu0 %v1437
    %1450 = vmatpush.bf16.msra.mxu0 %v1436
    %1451 = vmatmul.bf16.gmra.mxu0 %v1441
    %v1452 = vpop.f32.mrf.mxu0
    %v1453 = vadd.f32 0.0, %v1452
    %v1454 = vpop.f32.mrf.mxu0
    %v1455 = vadd.f32 0.0, %v1454
    %1456 = vdwg.mxu0
    %v1457 = vadd.f32 %v798, %v1453
    %v1458 = vadd.f32 %v799, %v1455
    %v1459 = vld [vmem:[%s13] sm:$0x1]
    %v1460 = vld [vmem:[%s14] sm:$0x1]
    %v1461 = vsel %vm171, %v1457, 0.0
    %1462 = vadd.xlane.f32.xlu0 %v1461
    %v1463 = vpop.xlane.xlu0 %1462
    %v1464 = vsel %vm171, %v1458, 0.0
    %1465 = vadd.xlane.f32.xlu0 %v1464
    %v1466 = vpop.xlane.xlu0 %1465
    %v1467 = vmul.f32 %v1463, %v184
    %v1468 = vmul.f32 %v1466, %v184
    %v1469 = vsub.f32 %v1457, %v1467
    %v1470 = vsub.f32 %v1458, %v1468
    %v1471 = vmul.f32 %v1469, %v1469
    %v1472 = vmul.f32 %v1470, %v1470
    %v1473 = vsel %vm171, %v1471, 0.0
    %1474 = vadd.xlane.f32.xlu0 %v1473
    %v1475 = vpop.xlane.xlu0 %1474
    %v1476 = vsel %vm171, %v1472, 0.0
    %1477 = vadd.xlane.f32.xlu0 %v1476
    %v1478 = vpop.xlane.xlu0 %1477
    %v1479 = vmul.f32 %v1475, %v184
    %v1480 = vmul.f32 %v1478, %v184
    %v1481 = vadd.f32 %v1479, 1e-06
    %v1482 = vadd.f32 %v1480, 1e-06
    %v1483 = vrsqrt.pop %v1481
    %v1484 = vmul.f32 %v1483, %v1481
    %v1485 = vmul.f32 %v1484, %v1483
    %v1486 = vmul.f32 0.5, %v1485
    %v1487 = vsub.f32 1.5, %v1486
    %v1488 = vmul.f32 %v1483, %v1487
    %vm1489 = vweird.f32 %v1481
    %vm1490 = vweird.f32 %v1483
    %vm1491 = vmor %vm1489, %vm1490
    %v1492 = vsel %vm1491, %v1483, %v1488
    %v1493 = vrsqrt.pop %v1482
    %v1494 = vmul.f32 %v1493, %v1482
    %v1495 = vmul.f32 %v1494, %v1493
    %v1496 = vmul.f32 0.5, %v1495
    %v1497 = vsub.f32 1.5, %v1496
    %v1498 = vmul.f32 %v1493, %v1497
    %vm1499 = vweird.f32 %v1482
    %vm1500 = vweird.f32 %v1493
    %vm1501 = vmor %vm1499, %vm1500
    %v1502 = vsel %vm1501, %v1493, %v1498
    %v1503 = vmul.f32 %v1469, %v1492
    %v1504 = vmul.f32 %v1470, %v1502
    %v1506 = vperm.slane %v1459, 0
    %v1508 = vmul.f32 %v1503, %v1506
    %v1509 = vmul.f32 %v1504, %v1506
    %v1511 = vperm.slane %v1460, 0
    %v1513 = vadd.f32 %v1508, %v1511
    %v1514 = vadd.f32 %v1509, %v1511
    %v1515 = vpack.c.bf16 %v1514, %v1513
    %v1516 = vld [vmem:[#allocation13] sm:$0xf]
    %v1517 = vld [vmem:[#allocation13 + $0x4] sm:$0xf]
    %v1518 = vld [vmem:[#allocation13 + $0x8] sm:$0xf]
    %v1519 = vld [vmem:[#allocation13 + $0xc] sm:$0xf]
    %v1524 = vunpack.c.l.b16 %v1516
    %v1525 = vunpack.c.l.b16 %v1517
    %v1526 = vunpack.c.l.b16 %v1518
    %v1527 = vunpack.c.l.b16 %v1519
    %v1528 = vpack.c.b16 %v1525, %v1524
    %v1529 = vpack.c.b16 %v1527, %v1526
    %v1533 = vsel %vm171, %v1515, 0
    %1535 = vmatpush.bf16.msra.mxu0 0
    %1536 = vmatpush.bf16.msra.mxu0 0
    %1537 = vmatpush.bf16.msra.mxu0 0
    %1538 = vmatpush.bf16.msra.mxu0 0
    %1539 = vmatpush.bf16.msra.mxu0 0
    %1540 = vmatpush.bf16.msra.mxu0 0
    %1541 = vmatpush.bf16.msra.mxu0 %v1529
    %1542 = vmatpush.bf16.msra.mxu0 %v1528
    %1543 = vmatmul.bf16.gmra.mxu0 %v1533
    %v1544 = vpop.f32.mrf.mxu0
    %v1545 = vadd.f32 0.0, %v1544
    %v1546 = vpop.f32.mrf.mxu0
    %v1547 = vadd.f32 0.0, %v1546
    %1548 = vdwg.mxu0
    %v1549 = vmul.f32 %v1545, %v1545
    %v1550 = vmul.f32 %v1547, %v1547
    %v1551 = vmul.f32 %v1545, %v1549
    %v1552 = vmul.f32 %v1547, %v1550
    %v1553 = vmul.f32 %v1551, 0.044715
    %v1554 = vmul.f32 %v1552, 0.044715
    %v1555 = vadd.f32 %v1545, %v1553
    %v1556 = vadd.f32 %v1547, %v1554
    %v1557 = vmul.f32 %v1555, 0.7978846
    %v1558 = vmul.f32 %v1556, 0.7978846
    %v1559 = vtanh.pop %v1557
    %v1560 = vtanh.pop %v1558
    %v1561 = vadd.f32 %v1559, 1.0
    %v1562 = vadd.f32 %v1560, 1.0
    %v1563 = vmul.f32 %v1561, 0.5
    %v1564 = vmul.f32 %v1562, 0.5
    %v1565 = vmul.f32 %v1545, %v1563
    %v1566 = vmul.f32 %v1547, %v1564
    %1569 = vrot.lane.b32.xlu0 %v1545, 64
    %v1570 = vpop.permute.xlu0 %1569
    %1571 = vrot.lane.b32.xlu0 %v1547, 64
    %v1572 = vpop.permute.xlu0 %1571
    %v1575 = vmul.f32 %v1565, %v1570
    %v1576 = vmul.f32 %v1566, %v1572
    %v1577 = vpack.c.bf16 %v1576, %v1575
    %v1578 = vld [vmem:[%s16] sm:$0xf]
    %v1579 = vld [vmem:[%s16 + $0x4] sm:$0xf]
    %v1580 = vld [vmem:[%s16 + $0x8] sm:$0xf]
    %v1581 = vld [vmem:[%s16 + $0xc] sm:$0xf]
    %v1582 = vld [vmem:[%s16 + $0x10] sm:$0xf]
    %v1583 = vld [vmem:[%s16 + $0x14] sm:$0xf]
    %v1584 = vld [vmem:[%s16 + $0x18] sm:$0xf]
    %v1585 = vld [vmem:[%s16 + $0x1c] sm:$0xf]
    %v1594 = vunpack.c.l.b16 %v1578
    %v1595 = vunpack.c.l.b16 %v1579
    %v1596 = vunpack.c.l.b16 %v1580
    %v1597 = vunpack.c.l.b16 %v1581
    %v1598 = vunpack.c.l.b16 %v1582
    %v1599 = vunpack.c.l.b16 %v1583
    %v1600 = vunpack.c.l.b16 %v1584
    %v1601 = vunpack.c.l.b16 %v1585
    %v1602 = vpack.c.b16 %v1595, %v1594
    %v1603 = vpack.c.b16 %v1597, %v1596
    %v1604 = vpack.c.b16 %v1599, %v1598
    %v1605 = vpack.c.b16 %v1601, %v1600
    %vm1610 = vcmask 523264
    %v1612 = vsel %vm1610, %v1577, 0
    %1614 = vmatpush.bf16.msra.mxu0 0
    %1615 = vmatpush.bf16.msra.mxu0 0
    %1616 = vmatpush.bf16.msra.mxu0 0
    %1617 = vmatpush.bf16.msra.mxu0 0
    %1618 = vmatpush.bf16.msra.mxu0 %v1605
    %1619 = vmatpush.bf16.msra.mxu0 %v1604
    %1620 = vmatpush.bf16.msra.mxu0 %v1603
    %1621 = vmatpush.bf16.msra.mxu0 %v1602
    %1622 = vmatmul.bf16.gmra.mxu0 %v1612
    %v1623 = vpop.f32.mrf.mxu0
    %v1624 = vadd.f32 0.0, %v1623
    %v1625 = vpop.f32.mrf.mxu0
    %v1626 = vadd.f32 0.0, %v1625
    %1627 = vdwg.mxu0
    %v1628 = vadd.f32 %v1457, %v1624
    %v1629 = vadd.f32 %v1458, %v1626
    %1630 = vst.msk [vmem:[#allocation14] sm:$0xff] %vm171, %v1628
    %1631 = vst.msk [vmem:[#allocation14 + $0x8] sm:$0xff] %vm171, %v1629
    // Predicated region
    $region98: #{tpu_custom_call.1} parent=1 // pred_check
      _
    $region99: #{tpu_custom_call.1} parent=1 // pred_check_branch
      %1633 = sbr.rel (0) target = $region101
    $region100: #{tpu_custom_call.1} parent=1 // pred_region
      %1635 = vsyncadd [#allocation4], 0
      %s1636 = sshll.u32 [#allocation14], 4
      %s1637 = int_to_ptr.vmem [resolvable:$true] %s1636
      %s1638 = sshll.u32 %s17, 4
      %s1639 = int_to_ptr.hbm [resolvable:$true] %s1638
      %1644 = dma.vmem_to_hbm [thread:$0]  %s1637, 256, %s1639, [#allocation4], 128, 128, 8
    $region101: #{tpu_custom_call.1} parent=1 // pred_fallthru
      _
    // Predicated region
    $region102: #{tpu_custom_call.1} parent=1 // pred_check
      _
    $region103: #{tpu_custom_call.1} parent=1 // pred_check_branch
      %1646 = sbr.rel (0) target = $region105
    $region104: #{tpu_custom_call.1} parent=1 // pred_region
      %1648 = dma.done [#allocation4], 256
    $region105: #{tpu_custom_call.1} parent=1 // pred_fallthru
      _
    %1649 = vsyncpa [#allocation3], 1
    %1650 = vsyncpa [#allocation6], 1
    %1651 = vsyncpa [#allocation9], 1
    %1652 = vsyncpa [#allocation12], 1
    %1653 = vsyncpa [#allocation4], 1

</llo_original>
